<compile_context>
chip_gen: v5e
topology: v5e:2x2
jax: 0.10.0
libtpu: 0.0.40
codegen_flags: <defaults>
</compile_context>

<pallas_src>
import functools

import numpy as np
import jax
import jax.numpy as jnp
from jax.experimental import pallas as pl
from jax.experimental.pallas import tpu as pltpu


def _round_up(a: int, m: int) -> int:
    return ((a + m - 1) // m) * m


def _encode_kernel(x_ref, w_ref, scale_ref, shift_ref, o_ref, *,
                   th, wp, wo_keep, cout, dil, activated, max_pool):
    # x_ref:     (1, RB, Cin)     bf16 flattened [row-block + halo, channels-last]
    # w_ref:     (9, Cin, Cout)   bf16 raw 3x3 taps (transposed)
    # scale_ref: (1, Cout)        f32 folded BN scale
    # shift_ref: (1, Cout)        f32 folded BN shift (includes conv bias)
    # o_ref:     (1, TH_out, wo_keep, Cout) f32
    x = x_ref[0]                                  # [RB, Cin]
    rows = th * wp

    # 3x3 conv as 9 dense per-tap matmuls; tap windows are sublane-offset slices only.
    acc = jnp.dot(x[0:rows, :], w_ref[0], preferred_element_type=jnp.float32)
    for t in range(1, 9):
        ky, kx = divmod(t, 3)
        off = ky * dil * wp + kx * dil
        acc = acc + jnp.dot(x[off:off + rows, :], w_ref[t],
                            preferred_element_type=jnp.float32)

    # Folded BatchNorm (+ conv bias) and ReLU, in f32.
    y = acc * scale_ref[...] + shift_ref[...]
    if activated:
        y = jnp.maximum(y, 0.0)

    # [TH*Wp, Cout] -> [TH, Wp, Cout]  (Wp is a multiple of 8 -> tile-aligned unfold).
    y3 = y.reshape(th, wp, cout)

    if max_pool:
        # H-pool: pair adjacent rows (leading-dim split, no relayout).
        y4 = y3.reshape(th // 2, 2, wp, cout)
        h = jnp.maximum(y4[:, 0], y4[:, 1])                       # [TH//2, Wp, Cout]
        # W-pool partial: max of adjacent columns; the stride-2 subsample of the even
        # columns is a trivial strided slice done in the wrapper on the HBM output
        # (in-kernel sublane-strided subsampling risks a relayout / lowering failure).
        out = jnp.maximum(h[:, :wo_keep, :], h[:, 1:wo_keep + 1, :])
    else:
        out = y3[:, :wo_keep, :]                                  # drop pad columns

    o_ref[0] = out.astype(o_ref.dtype)


def _pick_block_h(ho_eff, wp_r, cin, cout, max_pool, dil,
                  budget_bytes=4 * 1024 * 1024):
    """Largest divisor of ho_eff (even when pooling) whose tiles fit the VMEM budget."""
    for bh in range(ho_eff, 0, -1):
        if ho_eff % bh:
            continue
        if max_pool and bh % 2:
            continue
        rb = _round_up((bh + 2 * dil) * wp_r + 2 * dil, 8)
        in_bytes = rb * cin * 2                                   # bf16 input block
        th_out = bh // 2 if max_pool else bh
        out_bytes = th_out * wp_r * cout * 4                      # f32 output block (upper bound)
        if in_bytes <= budget_bytes and out_bytes <= budget_bytes:
            return bh
    return 2 if max_pool else 1


def unet_encode_layer(x, conv_w, conv_b, bn_gamma, bn_beta, bn_mean, bn_var,
                      *, padding=0, dilation=1, activated=True, max_pool=False,
                      eps=1e-5, block_h=None):
    """Forward pass of UnetEncodeLayer.  x: [N, Cin, H, W] (NCHW) -> NCHW output."""
    N, Cin, H, W = x.shape
    Cout = conv_w.shape[0]
    p, d = padding, dilation

    Ho = H + 2 * p - 2 * d
    Wo = W + 2 * p - 2 * d
    assert Ho >= 1 and Wo >= 1, "conv output would be empty"

    if max_pool:
        Ho_eff = (Ho // 2) * 2          # MaxPool2d(2,2) floors odd sizes
        Wo_keep = (Wo // 2) * 2
        assert Ho_eff >= 2 and Wo_keep >= 2
    else:
        Ho_eff, Wo_keep = Ho, Wo

    Hp, Wp = H + 2 * p, W + 2 * p
    Wp_r = _round_up(Wp, 8)                       # 8-aligned padded width (cheap reshapes)

    # Row-block size over conv-output rows: biggest block that fits the VMEM budget
    # (fewer grid steps, smaller halo fraction; per-step overhead ~0.35us).
    if block_h is None:
        block_h = _pick_block_h(Ho_eff, Wp_r, Cin, Cout, max_pool, d)
    assert Ho_eff % block_h == 0
    assert (not max_pool) or (block_h % 2 == 0)
    TH = block_h
    NB = Ho_eff // TH

    RB = _round_up((TH + 2 * d) * Wp_r + 2 * d, 8)  # rows per input block (incl. halo)

    # ---- device-side input prep (all jnp -> jittable / differentiable-friendly) ----
    x_nhwc = jnp.transpose(x, (0, 2, 3, 1)).astype(jnp.bfloat16)          # [N,H,W,Cin]
    x_pad = jnp.pad(x_nhwc, ((0, 0), (p, p), (p, Wp_r - W - p), (0, 0)))  # [N,Hp,Wp_r,Cin]
    x_flat = x_pad.reshape(N, Hp * Wp_r, Cin)
    needed = (NB - 1) * TH * Wp_r + RB
    if needed > Hp * Wp_r:
        x_flat = jnp.pad(x_flat, ((0, 0), (0, needed - Hp * Wp_r), (0, 0)))
    if NB == 1:
        # Single row-block: no halo duplication needed, plain slice (no HBM gather copy).
        x_blocks = x_flat[:, :RB, :]
    else:
        # Materialize the per-block halo (static gather; overlap is only 2*d rows/block).
        row_idx = (np.arange(NB) * (TH * Wp_r))[:, None] + np.arange(RB)[None, :]
        x_blocks = x_flat[:, row_idx, :].reshape(N * NB, RB, Cin)

    # Raw 3x3 taps, bf16, transposed to [9, Cin, Cout].
    w_taps = jnp.transpose(conv_w, (2, 3, 1, 0)).reshape(9, Cin, Cout).astype(jnp.bfloat16)
    # Fold BN (running stats) and the conv bias into one per-channel affine (f32).
    inv_std = bn_gamma / jnp.sqrt(bn_var + eps)
    scale = inv_std.reshape(1, Cout).astype(jnp.float32)
    shift = (bn_beta + (conv_b - bn_mean) * inv_std).reshape(1, Cout).astype(jnp.float32)

    TH_out = TH // 2 if max_pool else TH

    kern = functools.partial(_encode_kernel, th=TH, wp=Wp_r, wo_keep=Wo_keep,
                             cout=Cout, dil=d, activated=activated, max_pool=max_pool)

    flops = 2 * 9 * (N * NB) * (TH * Wp_r) * Cin * Cout
    bytes_accessed = (x_blocks.size * 2 + w_taps.size * 2 + 2 * Cout * 4
                      + (N * NB) * TH_out * Wo_keep * Cout * 4)

    out_flat = pl.pallas_call(
        kern,
        out_shape=jax.ShapeDtypeStruct((N * NB, TH_out, Wo_keep, Cout), jnp.float32),
        grid=(N, NB),
        in_specs=[
            pl.BlockSpec((1, RB, Cin), lambda b, j: (b * NB + j, 0, 0)),
            pl.BlockSpec((9, Cin, Cout), lambda b, j: (0, 0, 0)),
            pl.BlockSpec((1, Cout), lambda b, j: (0, 0)),
            pl.BlockSpec((1, Cout), lambda b, j: (0, 0)),
        ],
        out_specs=pl.BlockSpec((1, TH_out, Wo_keep, Cout),
                               lambda b, j: (b * NB + j, 0, 0, 0)),
        compiler_params=pltpu.CompilerParams(
            dimension_semantics=("parallel", "parallel"),
            vmem_limit_bytes=32 * 1024 * 1024),
        cost_estimate=pl.CostEstimate(flops=flops, transcendentals=0,
                                      bytes_accessed=bytes_accessed),
    )(x_blocks, w_taps, scale, shift)

    y = out_flat.reshape(N, NB * TH_out, Wo_keep, Cout)
    if max_pool:
        y = y[:, :, 0:Wo_keep:2, :]            # finish 2x2 pool: keep even columns
    return jnp.transpose(y, (0, 3, 1, 2))      # NHWC -> NCHW


def _reference(x, conv_w, conv_b, bn_gamma, bn_beta, bn_mean, bn_var,
               *, padding=0, dilation=1, activated=True, max_pool=False, eps=1e-5):
    """Pure-JAX f32 reference (eval-mode BatchNorm)."""
    y = jax.lax.conv_general_dilated(
        x, conv_w, window_strides=(1, 1),
        padding=((padding, padding), (padding, padding)),
        rhs_dilation=(dilation, dilation),
        dimension_numbers=('NCHW', 'OIHW', 'NCHW'))
    y = y + conv_b[None, :, None, None]
    inv_std = bn_gamma / jnp.sqrt(bn_var + eps)
    y = (y - bn_mean[None, :, None, None]) * inv_std[None, :, None, None] \
        + bn_beta[None, :, None, None]
    if activated:
        y = jnp.maximum(y, 0.0)
    if max_pool:
        y = jax.lax.reduce_window(y, -jnp.inf, jax.lax.max,
                                  (1, 1, 2, 2), (1, 1, 2, 2), 'VALID')
    return y


if __name__ == "__main__":
    N, CIN, H, W = 2, 4, 16, 16
    COUT = 8

    key = jax.random.PRNGKey(0)
    kw, kb, kg, kbe, km, kv, kx = jax.random.split(key, 7)
    bound = 1.0 / np.sqrt(CIN * 9)                       # PyTorch Conv2d default init range
    conv_w = jax.random.uniform(kw, (COUT, CIN, 3, 3), jnp.float32, -bound, bound)
    conv_b = jax.random.uniform(kb, (COUT,), jnp.float32, -bound, bound)
    gamma = jax.random.uniform(kg, (COUT,), jnp.float32, 0.5, 1.5)
    beta = 0.1 * jax.random.normal(kbe, (COUT,), jnp.float32)
    r_mean = 0.1 * jax.random.normal(km, (COUT,), jnp.float32)
    r_var = jax.random.uniform(kv, (COUT,), jnp.float32, 0.5, 1.5)
    x = jax.random.normal(kx, (N, CIN, H, W), jnp.float32)

    configs = [
        dict(padding=1, dilation=1, activated=True, max_pool=False),
        dict(padding=1, dilation=1, activated=True, max_pool=True),
        dict(padding=0, dilation=1, activated=True, max_pool=False),   # module defaults
        dict(padding=1, dilation=1, activated=True, max_pool=True, block_h=8),  # multi-block
    ]
    for cfg in configs:
        fwd = jax.jit(functools.partial(unet_encode_layer, **cfg))
        out = jax.block_until_ready(fwd(x, conv_w, conv_b, gamma, beta, r_mean, r_var))
        ref_cfg = {k: v for k, v in cfg.items() if k != "block_h"}
        ref = jax.block_until_ready(
            _reference(x, conv_w, conv_b, gamma, beta, r_mean, r_var, **ref_cfg))
        assert out.shape == ref.shape, (cfg, out.shape, ref.shape)
        # bf16 operands with f32 accumulation -> loosened tolerance.
        np.testing.assert_allclose(np.asarray(out), np.asarray(ref), rtol=2e-2, atol=2e-2)

    print("KERNEL_OK")
</pallas_src>

<mosaic_0001>
module attributes {stable_mosaic.version = 11 : i64} {
  func.func @_encode_kernel(%arg0: i32, %arg1: i32, %arg2: memref<1x440x4xbf16, #tpu.memory_space<vmem>>, %arg3: memref<9x4x8xbf16, #tpu.memory_space<vmem>>, %arg4: memref<1x8xf32, #tpu.memory_space<vmem>>, %arg5: memref<1x8xf32, #tpu.memory_space<vmem>>, %arg6: memref<1x16x16x8xf32, #tpu.memory_space<vmem>>) attributes {dimension_semantics = [#tpu.dimension_semantics<parallel>, #tpu.dimension_semantics<parallel>], iteration_bounds = array<i64: 2, 1>, scalar_prefetch = 0 : i64, scratch_operands = 0 : i64, tpu.core_type = #tpu.core_type<tc>, window_params = [{transform_indices = @transform_0, window_bounds = array<i64: 1, 440, 4>}, {pipeline_mode = #tpu.pipeline_mode<synchronous>, transform_indices = @transform_1, window_bounds = array<i64: 9, 4, 8>}, {pipeline_mode = #tpu.pipeline_mode<synchronous>, transform_indices = @transform_2, window_bounds = array<i64: 1, 8>}, {pipeline_mode = #tpu.pipeline_mode<synchronous>, transform_indices = @transform_3, window_bounds = array<i64: 1, 8>}, {transform_indices = @transform_4, window_bounds = array<i64: 1, 16, 16, 8>}]} {
    %c0 = arith.constant 0 : index
    %c0_0 = arith.constant 0 : index
    %c0_1 = arith.constant 0 : index
    %0 = vector.load %arg2[%c0, %c0_0, %c0_1] : memref<1x440x4xbf16, #tpu.memory_space<vmem>>, vector<1x440x4xbf16>
    %1 = vector.shape_cast %0 : vector<1x440x4xbf16> to vector<440x4xbf16>
    %2 = vector.extract_strided_slice %1 {offsets = [0, 0], sizes = [384, 4], strides = [1, 1]} : vector<440x4xbf16> to vector<384x4xbf16>
    %c0_2 = arith.constant 0 : index
    %c0_3 = arith.constant 0 : index
    %c0_4 = arith.constant 0 : index
    %3 = vector.load %arg3[%c0_2, %c0_3, %c0_4] : memref<9x4x8xbf16, #tpu.memory_space<vmem>>, vector<1x4x8xbf16>
    %4 = vector.shape_cast %3 : vector<1x4x8xbf16> to vector<4x8xbf16>
    %cst = arith.constant dense<0.000000e+00> : vector<384x8xf32>
    %5 = tpu.matmul %2, %4, %cst {dimension_numbers = #tpu.dot_dimension_numbers<[1], [0], [0], [1], [0, 0, 1, 1], [], []>} : vector<384x4xbf16>, vector<4x8xbf16>, vector<384x8xf32> -> vector<384x8xf32>
    %6 = vector.extract_strided_slice %1 {offsets = [1, 0], sizes = [384, 4], strides = [1, 1]} : vector<440x4xbf16> to vector<384x4xbf16>
    %c1 = arith.constant 1 : index
    %c0_5 = arith.constant 0 : index
    %c0_6 = arith.constant 0 : index
    %7 = vector.load %arg3[%c1, %c0_5, %c0_6] : memref<9x4x8xbf16, #tpu.memory_space<vmem>>, vector<1x4x8xbf16>
    %8 = vector.shape_cast %7 : vector<1x4x8xbf16> to vector<4x8xbf16>
    %cst_7 = arith.constant dense<0.000000e+00> : vector<384x8xf32>
    %9 = tpu.matmul %6, %8, %cst_7 {dimension_numbers = #tpu.dot_dimension_numbers<[1], [0], [0], [1], [0, 0, 1, 1], [], []>} : vector<384x4xbf16>, vector<4x8xbf16>, vector<384x8xf32> -> vector<384x8xf32>
    %10 = arith.addf %5, %9 : vector<384x8xf32>
    %11 = vector.extract_strided_slice %1 {offsets = [2, 0], sizes = [384, 4], strides = [1, 1]} : vector<440x4xbf16> to vector<384x4xbf16>
    %c2 = arith.constant 2 : index
    %c0_8 = arith.constant 0 : index
    %c0_9 = arith.constant 0 : index
    %12 = vector.load %arg3[%c2, %c0_8, %c0_9] : memref<9x4x8xbf16, #tpu.memory_space<vmem>>, vector<1x4x8xbf16>
    %13 = vector.shape_cast %12 : vector<1x4x8xbf16> to vector<4x8xbf16>
    %cst_10 = arith.constant dense<0.000000e+00> : vector<384x8xf32>
    %14 = tpu.matmul %11, %13, %cst_10 {dimension_numbers = #tpu.dot_dimension_numbers<[1], [0], [0], [1], [0, 0, 1, 1], [], []>} : vector<384x4xbf16>, vector<4x8xbf16>, vector<384x8xf32> -> vector<384x8xf32>
    %15 = arith.addf %10, %14 : vector<384x8xf32>
    %16 = vector.extract_strided_slice %1 {offsets = [24, 0], sizes = [384, 4], strides = [1, 1]} : vector<440x4xbf16> to vector<384x4xbf16>
    %c3 = arith.constant 3 : index
    %c0_11 = arith.constant 0 : index
    %c0_12 = arith.constant 0 : index
    %17 = vector.load %arg3[%c3, %c0_11, %c0_12] : memref<9x4x8xbf16, #tpu.memory_space<vmem>>, vector<1x4x8xbf16>
    %18 = vector.shape_cast %17 : vector<1x4x8xbf16> to vector<4x8xbf16>
    %cst_13 = arith.constant dense<0.000000e+00> : vector<384x8xf32>
    %19 = tpu.matmul %16, %18, %cst_13 {dimension_numbers = #tpu.dot_dimension_numbers<[1], [0], [0], [1], [0, 0, 1, 1], [], []>} : vector<384x4xbf16>, vector<4x8xbf16>, vector<384x8xf32> -> vector<384x8xf32>
    %20 = arith.addf %15, %19 : vector<384x8xf32>
    %21 = vector.extract_strided_slice %1 {offsets = [25, 0], sizes = [384, 4], strides = [1, 1]} : vector<440x4xbf16> to vector<384x4xbf16>
    %c4 = arith.constant 4 : index
    %c0_14 = arith.constant 0 : index
    %c0_15 = arith.constant 0 : index
    %22 = vector.load %arg3[%c4, %c0_14, %c0_15] : memref<9x4x8xbf16, #tpu.memory_space<vmem>>, vector<1x4x8xbf16>
    %23 = vector.shape_cast %22 : vector<1x4x8xbf16> to vector<4x8xbf16>
    %cst_16 = arith.constant dense<0.000000e+00> : vector<384x8xf32>
    %24 = tpu.matmul %21, %23, %cst_16 {dimension_numbers = #tpu.dot_dimension_numbers<[1], [0], [0], [1], [0, 0, 1, 1], [], []>} : vector<384x4xbf16>, vector<4x8xbf16>, vector<384x8xf32> -> vector<384x8xf32>
    %25 = arith.addf %20, %24 : vector<384x8xf32>
    %26 = vector.extract_strided_slice %1 {offsets = [26, 0], sizes = [384, 4], strides = [1, 1]} : vector<440x4xbf16> to vector<384x4xbf16>
    %c5 = arith.constant 5 : index
    %c0_17 = arith.constant 0 : index
    %c0_18 = arith.constant 0 : index
    %27 = vector.load %arg3[%c5, %c0_17, %c0_18] : memref<9x4x8xbf16, #tpu.memory_space<vmem>>, vector<1x4x8xbf16>
    %28 = vector.shape_cast %27 : vector<1x4x8xbf16> to vector<4x8xbf16>
    %cst_19 = arith.constant dense<0.000000e+00> : vector<384x8xf32>
    %29 = tpu.matmul %26, %28, %cst_19 {dimension_numbers = #tpu.dot_dimension_numbers<[1], [0], [0], [1], [0, 0, 1, 1], [], []>} : vector<384x4xbf16>, vector<4x8xbf16>, vector<384x8xf32> -> vector<384x8xf32>
    %30 = arith.addf %25, %29 : vector<384x8xf32>
    %31 = vector.extract_strided_slice %1 {offsets = [48, 0], sizes = [384, 4], strides = [1, 1]} : vector<440x4xbf16> to vector<384x4xbf16>
    %c6 = arith.constant 6 : index
    %c0_20 = arith.constant 0 : index
    %c0_21 = arith.constant 0 : index
    %32 = vector.load %arg3[%c6, %c0_20, %c0_21] : memref<9x4x8xbf16, #tpu.memory_space<vmem>>, vector<1x4x8xbf16>
    %33 = vector.shape_cast %32 : vector<1x4x8xbf16> to vector<4x8xbf16>
    %cst_22 = arith.constant dense<0.000000e+00> : vector<384x8xf32>
    %34 = tpu.matmul %31, %33, %cst_22 {dimension_numbers = #tpu.dot_dimension_numbers<[1], [0], [0], [1], [0, 0, 1, 1], [], []>} : vector<384x4xbf16>, vector<4x8xbf16>, vector<384x8xf32> -> vector<384x8xf32>
    %35 = arith.addf %30, %34 : vector<384x8xf32>
    %36 = vector.extract_strided_slice %1 {offsets = [49, 0], sizes = [384, 4], strides = [1, 1]} : vector<440x4xbf16> to vector<384x4xbf16>
    %c7 = arith.constant 7 : index
    %c0_23 = arith.constant 0 : index
    %c0_24 = arith.constant 0 : index
    %37 = vector.load %arg3[%c7, %c0_23, %c0_24] : memref<9x4x8xbf16, #tpu.memory_space<vmem>>, vector<1x4x8xbf16>
    %38 = vector.shape_cast %37 : vector<1x4x8xbf16> to vector<4x8xbf16>
    %cst_25 = arith.constant dense<0.000000e+00> : vector<384x8xf32>
    %39 = tpu.matmul %36, %38, %cst_25 {dimension_numbers = #tpu.dot_dimension_numbers<[1], [0], [0], [1], [0, 0, 1, 1], [], []>} : vector<384x4xbf16>, vector<4x8xbf16>, vector<384x8xf32> -> vector<384x8xf32>
    %40 = arith.addf %35, %39 : vector<384x8xf32>
    %41 = vector.extract_strided_slice %1 {offsets = [50, 0], sizes = [384, 4], strides = [1, 1]} : vector<440x4xbf16> to vector<384x4xbf16>
    %c8 = arith.constant 8 : index
    %c0_26 = arith.constant 0 : index
    %c0_27 = arith.constant 0 : index
    %42 = vector.load %arg3[%c8, %c0_26, %c0_27] : memref<9x4x8xbf16, #tpu.memory_space<vmem>>, vector<1x4x8xbf16>
    %43 = vector.shape_cast %42 : vector<1x4x8xbf16> to vector<4x8xbf16>
    %cst_28 = arith.constant dense<0.000000e+00> : vector<384x8xf32>
    %44 = tpu.matmul %41, %43, %cst_28 {dimension_numbers = #tpu.dot_dimension_numbers<[1], [0], [0], [1], [0, 0, 1, 1], [], []>} : vector<384x4xbf16>, vector<4x8xbf16>, vector<384x8xf32> -> vector<384x8xf32>
    %45 = arith.addf %40, %44 : vector<384x8xf32>
    %c0_29 = arith.constant 0 : index
    %c0_30 = arith.constant 0 : index
    %46 = vector.load %arg4[%c0_29, %c0_30] : memref<1x8xf32, #tpu.memory_space<vmem>>, vector<1x8xf32>
    %47 = vector.broadcast %46 : vector<1x8xf32> to vector<384x8xf32>
    %48 = arith.mulf %45, %47 : vector<384x8xf32>
    %c0_31 = arith.constant 0 : index
    %c0_32 = arith.constant 0 : index
    %49 = vector.load %arg5[%c0_31, %c0_32] : memref<1x8xf32, #tpu.memory_space<vmem>>, vector<1x8xf32>
    %50 = vector.broadcast %49 : vector<1x8xf32> to vector<384x8xf32>
    %51 = arith.addf %48, %50 : vector<384x8xf32>
    %cst_33 = arith.constant 0.000000e+00 : f32
    %52 = vector.broadcast %cst_33 : f32 to vector<384x8xf32>
    %53 = arith.maximumf %51, %52 : vector<384x8xf32>
    %54 = vector.shape_cast %53 : vector<384x8xf32> to vector<16x24x8xf32>
    %55 = vector.extract_strided_slice %54 {offsets = [0, 0, 0], sizes = [16, 16, 8], strides = [1, 1, 1]} : vector<16x24x8xf32> to vector<16x16x8xf32>
    %c0_34 = arith.constant 0 : index
    %c0_35 = arith.constant 0 : index
    %c0_36 = arith.constant 0 : index
    %c0_37 = arith.constant 0 : index
    %56 = vector.load %arg6[%c0_34, %c0_35, %c0_36, %c0_37] : memref<1x16x16x8xf32, #tpu.memory_space<vmem>>, vector<1x16x16x8xf32>
    %57 = vector.shape_cast %56 : vector<1x16x16x8xf32> to vector<16x16x8xf32>
    %58 = vector.shape_cast %55 : vector<16x16x8xf32> to vector<1x16x16x8xf32>
    tpu.vector_store %arg6[%c0_34, %c0_35, %c0_36, %c0_37], %58 {strides = array<i32>} : memref<1x16x16x8xf32, #tpu.memory_space<vmem>>, vector<1x16x16x8xf32>,
    return
  }
  func.func @transform_0(%arg0: i32, %arg1: i32) -> (i32, i32, i32) {
    %c1_i32 = arith.constant 1 : i32
    %0 = arith.muli %arg0, %c1_i32 : i32
    %1 = arith.addi %0, %arg1 : i32
    %c0_i32 = arith.constant 0 : i32
    %c0_i32_0 = arith.constant 0 : i32
    %c0_i32_1 = arith.constant 0 : i32
    return %1, %c0_i32, %c0_i32_0 : i32, i32, i32
  }
  func.func @transform_1(%arg0: i32, %arg1: i32) -> (i32, i32, i32) {
    %c0_i32 = arith.constant 0 : i32
    %c0_i32_0 = arith.constant 0 : i32
    %c0_i32_1 = arith.constant 0 : i32
    %c0_i32_2 = arith.constant 0 : i32
    return %c0_i32, %c0_i32_0, %c0_i32_1 : i32, i32, i32
  }
  func.func @transform_2(%arg0: i32, %arg1: i32) -> (i32, i32) {
    %c0_i32 = arith.constant 0 : i32
    %c0_i32_0 = arith.constant 0 : i32
    %c0_i32_1 = arith.constant 0 : i32
    return %c0_i32, %c0_i32_0 : i32, i32
  }
  func.func @transform_3(%arg0: i32, %arg1: i32) -> (i32, i32) {
    %c0_i32 = arith.constant 0 : i32
    %c0_i32_0 = arith.constant 0 : i32
    %c0_i32_1 = arith.constant 0 : i32
    return %c0_i32, %c0_i32_0 : i32, i32
  }
  func.func @transform_4(%arg0: i32, %arg1: i32) -> (i32, i32, i32, i32) {
    %c1_i32 = arith.constant 1 : i32
    %0 = arith.muli %arg0, %c1_i32 : i32
    %1 = arith.addi %0, %arg1 : i32
    %c0_i32 = arith.constant 0 : i32
    %c0_i32_0 = arith.constant 0 : i32
    %c0_i32_1 = arith.constant 0 : i32
    %c0_i32_2 = arith.constant 0 : i32
    return %1, %c0_i32, %c0_i32_0, %c0_i32_1 : i32, i32, i32, i32
  }
}

</mosaic_0001>

<llo_original>
// kernel: unet_encode_layer.1
$region0: #{unet_encode_layer.1}
  #allocation0 [shape = 'u32[]', space=smem, size = 0x4, offset = 0x4, fixed_abs, tag = 'smem constant byte address 0x4 - core index']
  #allocation1 [shape = 'u32[72,128]{1,0:T(1,128)}', space=vmem, size = 0x9000, scoped, tag = 'internal scratch']
  %s0 = inlined_call_operand.vmem [shape: bf16[2,440,4], index: 0, kind: input, shape index: {}]
  %s1 = inlined_call_operand.vmem [shape: bf16[9,4,8], index: 1, kind: input, shape index: {}]
  %s2 = inlined_call_operand.vmem [shape: f32[1,8], index: 2, kind: input, shape index: {}]
  %s3 = inlined_call_operand.vmem [shape: f32[1,8], index: 3, kind: input, shape index: {}]
  %s4 = inlined_call_operand.vmem [shape: f32[2,16,16,8], index: 4, kind: output, shape index: {}]
  %s5 = sld [smem:[#allocation0]]
  $region49: #{unet_encode_layer.1} parent=0
    _
  %s7 = ssub.s32 1, %s5
  %s8 = scalar_select 0, %s7, %s5
  loop: start=0, step=1, limit=4
  $region2: #{unet_encode_layer.1} parent=0 // loop_pre_header
    _
  $region3: #{unet_encode_layer.1} parent=0 // loop_header
    %s10 = sphi 0, %s14
    %p11 = scmp.ge.s32.totalorder %s10, 4
    %s17 = sphi 0, %s29
    %s18 = sphi 0, %s25
    %s19 = sphi 0, %s17
    %s20 = sphi 0, %s18
    %s21 = sphi 0, %s19
    %s22 = sphi 0, %s20
    %s34 = sphi 0, %s36
    %s37 = sphi 0, %s34
    %s38 = sphi 0, %s37
    %s54 = sphi 0, %s38
    %s58 = sphi 0, %s58
    %s60 = sphi 0, %s58
    %s61 = sphi 0, %s60
    %s75 = sphi 0, %s61
    %s79 = sphi 0, %s79
    %s81 = sphi 0, %s79
    %s82 = sphi 0, %s81
    %s96 = sphi 0, %s82
    %s100 = sphi 0, %s100
    %s102 = sphi 0, %s100
    %s103 = sphi 0, %s102
    %s117 = sphi 0, %s103
    %s125 = sphi 0, %s127
    %s128 = sphi 0, %s125
    %s129 = sphi 0, %s128
    %s145 = sphi 0, %s129
  $region4: #{unet_encode_layer.1} parent=0 // loop_header_branch
    %13 = sbr.rel (%p11) target = $region8
  $region5: #{unet_encode_layer.1} parent=0 // loop_body
    %s15 = ssub.s32 %s10, 1
    %s16 = ssub.s32 %s10, 2
    %s23 = sadd.s32 1, %s18
    %p24 = scmp.ge.s32.totalorder %s23, 1
    %s25 = scalar_select %p24, 0, %s23
    %s26 = sadd.s32 1, %s17
    %s27 = scalar_select %p24, %s26, %s17
    %p28 = scmp.ge.s32.totalorder %s27, 2
    %s29 = scalar_select %p28, 0, %s27
    %s30 = sadd.s32 %s17, %s18
    %s31 = sadd.s32 %s29, %s25
    %s32 = ssub.s32 %s30, %s31
    %p33 = scmp.eq.s32.totalorder %s32, 0
    %s35 = sadd.s32 %s34, 1
    %s36 = scalar_select %p33, %s34, %s35
    %p39 = pneg %p33
    %p40 = scmp.eq.s32.totalorder %s10, 1
    %p41 = por %p39, %p40
    %p42 = scmp.ne.s32.totalorder %s34, %s37
    %p43 = scmp.eq.s32.totalorder %s10, 0
    %p44 = por %p42, %p43
    %p45 = scmp.ne.s32.totalorder %s34, %s37
    %p46 = scmp.eq.s32.totalorder %s15, 1
    %p47 = por %p45, %p46
    %p48 = scmp.ne.s32.totalorder %s37, %s38
    %p49 = scmp.eq.s32.totalorder %s15, 0
    %p50 = por %p48, %p49
    %p51 = scmp.ne.s32.totalorder %s37, %s38
    %p52 = scmp.eq.s32.totalorder %s16, 1
    %p53 = por %p51, %p52
    %p55 = scmp.ne.s32.totalorder %s38, %s54
    %p56 = scmp.eq.s32.totalorder %s16, 0
    %p57 = por %p55, %p56
    %s59 = sadd.s32 %s58, 1
    %p62 = scmp.eq.s32.totalorder %s10, 1
    %p63 = scmp.ne.s32.totalorder %s58, %s60
    %p64 = scmp.eq.s32.totalorder %s10, 0
    %p65 = por %p63, %p64
    %p66 = scmp.ne.s32.totalorder %s58, %s60
    %p67 = scmp.eq.s32.totalorder %s15, 1
    %p68 = por %p66, %p67
    %p69 = scmp.ne.s32.totalorder %s60, %s61
    %p70 = scmp.eq.s32.totalorder %s15, 0
    %p71 = por %p69, %p70
    %p72 = scmp.ne.s32.totalorder %s60, %s61
    %p73 = scmp.eq.s32.totalorder %s16, 1
    %p74 = por %p72, %p73
    %p76 = scmp.ne.s32.totalorder %s61, %s75
    %p77 = scmp.eq.s32.totalorder %s16, 0
    %p78 = por %p76, %p77
    %s80 = sadd.s32 %s79, 1
    %p83 = scmp.eq.s32.totalorder %s10, 1
    %p84 = scmp.ne.s32.totalorder %s79, %s81
    %p85 = scmp.eq.s32.totalorder %s10, 0
    %p86 = por %p84, %p85
    %p87 = scmp.ne.s32.totalorder %s79, %s81
    %p88 = scmp.eq.s32.totalorder %s15, 1
    %p89 = por %p87, %p88
    %p90 = scmp.ne.s32.totalorder %s81, %s82
    %p91 = scmp.eq.s32.totalorder %s15, 0
    %p92 = por %p90, %p91
    %p93 = scmp.ne.s32.totalorder %s81, %s82
    %p94 = scmp.eq.s32.totalorder %s16, 1
    %p95 = por %p93, %p94
    %p97 = scmp.ne.s32.totalorder %s82, %s96
    %p98 = scmp.eq.s32.totalorder %s16, 0
    %p99 = por %p97, %p98
    %s101 = sadd.s32 %s100, 1
    %p104 = scmp.eq.s32.totalorder %s10, 1
    %p105 = scmp.ne.s32.totalorder %s100, %s102
    %p106 = scmp.eq.s32.totalorder %s10, 0
    %p107 = por %p105, %p106
    %p108 = scmp.ne.s32.totalorder %s100, %s102
    %p109 = scmp.eq.s32.totalorder %s15, 1
    %p110 = por %p108, %p109
    %p111 = scmp.ne.s32.totalorder %s102, %s103
    %p112 = scmp.eq.s32.totalorder %s15, 0
    %p113 = por %p111, %p112
    %p114 = scmp.ne.s32.totalorder %s102, %s103
    %p115 = scmp.eq.s32.totalorder %s16, 1
    %p116 = por %p114, %p115
    %p118 = scmp.ne.s32.totalorder %s103, %s117
    %p119 = scmp.eq.s32.totalorder %s16, 0
    %p120 = por %p118, %p119
    %s121 = sadd.s32 %s17, %s18
    %s122 = sadd.s32 %s29, %s25
    %s123 = ssub.s32 %s121, %s122
    %p124 = scmp.eq.s32.totalorder %s123, 0
    %s126 = sadd.s32 %s125, 1
    %s127 = scalar_select %p124, %s125, %s126
    %p130 = pneg %p124
    %p131 = scmp.eq.s32.totalorder %s10, 1
    %p132 = por %p130, %p131
    %p133 = scmp.ne.s32.totalorder %s125, %s128
    %p134 = scmp.eq.s32.totalorder %s10, 0
    %p135 = por %p133, %p134
    %p136 = scmp.ne.s32.totalorder %s125, %s128
    %p137 = scmp.eq.s32.totalorder %s15, 1
    %p138 = por %p136, %p137
    %p139 = scmp.ne.s32.totalorder %s128, %s129
    %p140 = scmp.eq.s32.totalorder %s15, 0
    %p141 = por %p139, %p140
    %p142 = scmp.ne.s32.totalorder %s128, %s129
    %p143 = scmp.eq.s32.totalorder %s16, 1
    %p144 = por %p142, %p143
    %p146 = scmp.ne.s32.totalorder %s129, %s145
    %p147 = scmp.eq.s32.totalorder %s16, 0
    %p148 = por %p146, %p147
    %p149 = scmp.le.s32.totalorder 1, %s10
    %p150 = scmp.lt.s32.totalorder %s10, 3
    %p151 = pnand %p149, %p150
    %p152 = pneg %p151
    // Predicated region
    $region9: #{unet_encode_layer.1} parent=5 // pred_check
      _
    $region10: #{unet_encode_layer.1} parent=5 // pred_check_branch
      %154 = sbr.rel (%p151) target = $region12
    $region11: #{unet_encode_layer.1} parent=5 // pred_region
      %s155 = ssub.s32 %s10, 1
      // Predicated region
      $region13: #{unet_encode_layer.1} parent=11 // pred_check
        %p156 = pneg %p71
      $region14: #{unet_encode_layer.1} parent=11 // pred_check_branch
        %158 = sbr.rel (%p156) target = $region16
      $region15: #{unet_encode_layer.1} parent=11 // pred_region
        _
      $region16: #{unet_encode_layer.1} parent=11 // pred_fallthru
        _
      // Predicated region
      $region17: #{unet_encode_layer.1} parent=11 // pred_check
        %p159 = pneg %p92
      $region18: #{unet_encode_layer.1} parent=11 // pred_check_branch
        %161 = sbr.rel (%p159) target = $region20
      $region19: #{unet_encode_layer.1} parent=11 // pred_region
        _
      $region20: #{unet_encode_layer.1} parent=11 // pred_fallthru
        _
      // Predicated region
      $region21: #{unet_encode_layer.1} parent=11 // pred_check
        %p162 = pneg %p113
      $region22: #{unet_encode_layer.1} parent=11 // pred_check_branch
        %164 = sbr.rel (%p162) target = $region24
      $region23: #{unet_encode_layer.1} parent=11 // pred_region
        _
      $region24: #{unet_encode_layer.1} parent=11 // pred_fallthru
        _
    $region12: #{unet_encode_layer.1} parent=5 // pred_fallthru
      _
    %p165 = scmp.lt.s32.totalorder %s10, 2
    // Predicated region
    $region25: #{unet_encode_layer.1} parent=5 // pred_check
      %p166 = pneg %p165
    $region26: #{unet_encode_layer.1} parent=5 // pred_check_branch
      %168 = sbr.rel (%p166) target = $region28
    $region27: #{unet_encode_layer.1} parent=5 // pred_region
      // Predicated region
      $region29: #{unet_encode_layer.1} parent=27 // pred_check
        %p169 = pneg %p44
      $region30: #{unet_encode_layer.1} parent=27 // pred_check_branch
        %171 = sbr.rel (%p169) target = $region32
      $region31: #{unet_encode_layer.1} parent=27 // pred_region
        %s172 = sadd.s32 %s17, %s18
        %p173 = scmp.lt.s32.totalorder %s172, 1
        %s174 = scalar_select %p173, %s172, 1
        %s175 = smul.addr %s174, 55
        %s176 = smul.addr %s175, 4
        %s177 = scalar_lea.vmem %s0, %s176
        %s178 = sadd.s32 %s17, %s18
      $region32: #{unet_encode_layer.1} parent=27 // pred_fallthru
        _
    $region28: #{unet_encode_layer.1} parent=5 // pred_fallthru
      _
    %p179 = scmp.le.s32.totalorder 1, %s10
    %p180 = scmp.lt.s32.totalorder %s10, 3
    %p181 = pnand %p179, %p180
    %p182 = pneg %p181
    // Predicated region
    $region33: #{unet_encode_layer.1} parent=5 // pred_check
      _
    $region34: #{unet_encode_layer.1} parent=5 // pred_check_branch
      %184 = sbr.rel (%p181) target = $region36
    $region35: #{unet_encode_layer.1} parent=5 // pred_region
      %s185 = ssub.s32 %s10, 1
      %s186 = sadd.s32 %s19, %s20
      %p187 = scmp.lt.s32.totalorder %s186, 1
      %s188 = scalar_select %p187, %s186, 1
      %s189 = smul.addr %s188, 55
      %s190 = smul.addr %s189, 4
      %s191 = scalar_lea.vmem %s0, %s190
      %p192 = pneg %p50
      %p193 = pneg %p47
      %p194 = pneg %p71
      %p195 = pneg %p68
      %p196 = pneg %p92
      %p197 = pneg %p89
      %p198 = pneg %p113
      %p199 = pneg %p110
      %p200 = pneg %p141
      %p201 = pneg %p138
      %s202 = sadd.s32 %s19, %s20
      %p203 = scmp.lt.s32.totalorder %s202, 1
      %s204 = scalar_select %p203, %s202, 1
      %s205 = smul.addr %s204, 32
      %s206 = smul.addr %s205, 8
      %s207 = scalar_lea.vmem %s4, %s206
      %s208 = sadd.s32 %s19, %s20
      %p209 = scmp.lt.s32.totalorder %s208, 1
      %s210 = scalar_select %p209, %s208, 1
      %s211 = smul.addr %s210, 55
      %s212 = smul.addr %s211, 4
      %s213 = scalar_lea.vmem %s0, %s212
      %s214 = sadd.s32 %s19, %s20
      %s215 = sadd.s32 %s19, %s20
      %p216 = scmp.lt.s32.totalorder %s215, 1
      %s217 = scalar_select %p216, %s215, 1
      %s218 = smul.addr %s217, 32
      %s219 = smul.addr %s218, 8
      %s220 = scalar_lea.vmem %s4, %s219
      %s221 = sadd.s32 %s19, %s20
      %v223 = vld [vmem:[%s213] sm:$0xf]
      %v224 = vld [vmem:[%s213 + $0x4] sm:$0xf]
      %v225 = vld [vmem:[%s213 + $0x8] sm:$0xf]
      %v226 = vld [vmem:[%s213 + $0xc] sm:$0xf]
      %v227 = vld [vmem:[%s213 + $0x10] sm:$0xf]
      %v228 = vld [vmem:[%s213 + $0x14] sm:$0xf]
      %v229 = vld [vmem:[%s213 + $0x18] sm:$0xf]
      %v230 = vld [vmem:[%s213 + $0x1c] sm:$0xf]
      %v231 = vld [vmem:[%s213 + $0x20] sm:$0xf]
      %v232 = vld [vmem:[%s213 + $0x24] sm:$0xf]
      %v233 = vld [vmem:[%s213 + $0x28] sm:$0xf]
      %v234 = vld [vmem:[%s213 + $0x2c] sm:$0xf]
      %v235 = vld [vmem:[%s213 + $0x30] sm:$0xf]
      %v236 = vld [vmem:[%s213 + $0x34] sm:$0xf]
      %v237 = vld [vmem:[%s213 + $0x38] sm:$0xf]
      %v238 = vld [vmem:[%s213 + $0x3c] sm:$0xf]
      %v239 = vld [vmem:[%s213 + $0x40] sm:$0xf]
      %v240 = vld [vmem:[%s213 + $0x44] sm:$0xf]
      %v241 = vld [vmem:[%s213 + $0x48] sm:$0xf]
      %v242 = vld [vmem:[%s213 + $0x4c] sm:$0xf]
      %v243 = vld [vmem:[%s213 + $0x50] sm:$0xf]
      %v244 = vld [vmem:[%s213 + $0x54] sm:$0xf]
      %v245 = vld [vmem:[%s213 + $0x58] sm:$0xf]
      %v246 = vld [vmem:[%s213 + $0x5c] sm:$0xf]
      %v247 = vld [vmem:[%s213 + $0x60] sm:$0xf]
      %v248 = vld [vmem:[%s213 + $0x64] sm:$0xf]
      %v249 = vld [vmem:[%s213 + $0x68] sm:$0xf]
      %v250 = vld [vmem:[%s213 + $0x6c] sm:$0xf]
      %v251 = vld [vmem:[%s213 + $0x70] sm:$0xf]
      %v252 = vld [vmem:[%s213 + $0x74] sm:$0xf]
      %v253 = vld [vmem:[%s213 + $0x78] sm:$0xf]
      %v254 = vld [vmem:[%s213 + $0x7c] sm:$0xf]
      %v255 = vld [vmem:[%s213 + $0x80] sm:$0xf]
      %v256 = vld [vmem:[%s213 + $0x84] sm:$0xf]
      %v257 = vld [vmem:[%s213 + $0x88] sm:$0xf]
      %v258 = vld [vmem:[%s213 + $0x8c] sm:$0xf]
      %v259 = vld [vmem:[%s213 + $0x90] sm:$0xf]
      %v260 = vld [vmem:[%s213 + $0x94] sm:$0xf]
      %v261 = vld [vmem:[%s213 + $0x98] sm:$0xf]
      %v262 = vld [vmem:[%s213 + $0x9c] sm:$0xf]
      %v263 = vld [vmem:[%s213 + $0xa0] sm:$0xf]
      %v264 = vld [vmem:[%s213 + $0xa4] sm:$0xf]
      %v265 = vld [vmem:[%s213 + $0xa8] sm:$0xf]
      %v266 = vld [vmem:[%s213 + $0xac] sm:$0xf]
      %v267 = vld [vmem:[%s213 + $0xb0] sm:$0xf]
      %v268 = vld [vmem:[%s213 + $0xb4] sm:$0xf]
      %v269 = vld [vmem:[%s213 + $0xb8] sm:$0xf]
      %v270 = vld [vmem:[%s213 + $0xbc] sm:$0xf]
      %v271 = vld [vmem:[%s213 + $0xc0] sm:$0xf]
      %v272 = vld [vmem:[%s213 + $0xc4] sm:$0xf]
      %v273 = vld [vmem:[%s213 + $0xc8] sm:$0xf]
      %v274 = vld [vmem:[%s213 + $0xcc] sm:$0xf]
      %v275 = vld [vmem:[%s213 + $0xd0] sm:$0xf]
      %v276 = vld [vmem:[%s213 + $0xd4] sm:$0xf]
      %v277 = vld [vmem:[%s213 + $0xd8] sm:$0xf]
      %v278 = vld [vmem:[%s1] sm:$0x3]
      %s279 = scalar_lea.vmem %s1, 2
      %v280 = vld [vmem:[%s279] sm:$0x3]
      %v330 = vunpack.c.l.b16 %v223
      %v331 = vunpack.c.l.b16 %v224
      %v332 = vunpack.c.l.b16 %v225
      %v333 = vunpack.c.l.b16 %v226
      %v334 = vunpack.c.l.b16 %v227
      %v335 = vunpack.c.l.b16 %v228
      %v336 = vunpack.c.l.b16 %v229
      %v337 = vunpack.c.l.b16 %v230
      %v338 = vunpack.c.l.b16 %v231
      %v339 = vunpack.c.l.b16 %v232
      %v340 = vunpack.c.l.b16 %v233
      %v341 = vunpack.c.l.b16 %v234
      %v342 = vunpack.c.l.b16 %v235
      %v343 = vunpack.c.l.b16 %v236
      %v344 = vunpack.c.l.b16 %v237
      %v345 = vunpack.c.l.b16 %v238
      %v346 = vunpack.c.l.b16 %v239
      %v347 = vunpack.c.l.b16 %v240
      %v348 = vunpack.c.l.b16 %v241
      %v349 = vunpack.c.l.b16 %v242
      %v350 = vunpack.c.l.b16 %v243
      %v351 = vunpack.c.l.b16 %v244
      %v352 = vunpack.c.l.b16 %v245
      %v353 = vunpack.c.l.b16 %v246
      %v354 = vunpack.c.l.b16 %v247
      %v355 = vunpack.c.l.b16 %v248
      %v356 = vunpack.c.l.b16 %v249
      %v357 = vunpack.c.l.b16 %v250
      %v358 = vunpack.c.l.b16 %v251
      %v359 = vunpack.c.l.b16 %v252
      %v360 = vunpack.c.l.b16 %v253
      %v361 = vunpack.c.l.b16 %v254
      %v362 = vunpack.c.l.b16 %v255
      %v363 = vunpack.c.l.b16 %v256
      %v364 = vunpack.c.l.b16 %v257
      %v365 = vunpack.c.l.b16 %v258
      %v366 = vunpack.c.l.b16 %v259
      %v367 = vunpack.c.l.b16 %v260
      %v368 = vunpack.c.l.b16 %v261
      %v369 = vunpack.c.l.b16 %v262
      %v370 = vunpack.c.l.b16 %v263
      %v371 = vunpack.c.l.b16 %v264
      %v372 = vunpack.c.l.b16 %v265
      %v373 = vunpack.c.l.b16 %v266
      %v374 = vunpack.c.l.b16 %v267
      %v375 = vunpack.c.l.b16 %v268
      %v376 = vunpack.c.l.b16 %v269
      %v377 = vunpack.c.l.b16 %v270
      %v378 = vunpack.c.l.b16 %v271
      %v379 = vpack.c.b16 %v331, %v330
      %v380 = vpack.c.b16 %v333, %v332
      %v381 = vpack.c.b16 %v335, %v334
      %v382 = vpack.c.b16 %v337, %v336
      %v383 = vpack.c.b16 %v339, %v338
      %v384 = vpack.c.b16 %v341, %v340
      %v385 = vpack.c.b16 %v343, %v342
      %v386 = vpack.c.b16 %v345, %v344
      %v387 = vpack.c.b16 %v347, %v346
      %v388 = vpack.c.b16 %v349, %v348
      %v389 = vpack.c.b16 %v351, %v350
      %v390 = vpack.c.b16 %v353, %v352
      %v391 = vpack.c.b16 %v355, %v354
      %v392 = vpack.c.b16 %v357, %v356
      %v393 = vpack.c.b16 %v359, %v358
      %v394 = vpack.c.b16 %v361, %v360
      %v395 = vpack.c.b16 %v363, %v362
      %v396 = vpack.c.b16 %v365, %v364
      %v397 = vpack.c.b16 %v367, %v366
      %v398 = vpack.c.b16 %v369, %v368
      %v399 = vpack.c.b16 %v371, %v370
      %v400 = vpack.c.b16 %v373, %v372
      %v401 = vpack.c.b16 %v375, %v374
      %v402 = vpack.c.b16 %v377, %v376
      %v403 = vpack.c.b16 %v378, %v378
      %vm404 = vsmask.f32 7424
      %v406 = vshrl.u32 %v379, 16
      %v408 = vshll.u32 %v379, 16
      %v410 = vrot.slane %v408, 1
      %v411 = vor.u32 %v406, %v410
      %v413 = vshll.u32 %v380, 16
      %v415 = vrot.slane %v413, 1
      %v416 = vsel %vm404, %v411, %v415
      %v417 = vshrl.u32 %v380, 16
      %v419 = vor.u32 %v417, %v415
      %v421 = vshll.u32 %v381, 16
      %v423 = vrot.slane %v421, 1
      %v424 = vsel %vm404, %v419, %v423
      %v425 = vshrl.u32 %v381, 16
      %v427 = vor.u32 %v425, %v423
      %v429 = vshll.u32 %v382, 16
      %v431 = vrot.slane %v429, 1
      %v432 = vsel %vm404, %v427, %v431
      %v433 = vshrl.u32 %v382, 16
      %v435 = vor.u32 %v433, %v431
      %v437 = vshll.u32 %v383, 16
      %v439 = vrot.slane %v437, 1
      %v440 = vsel %vm404, %v435, %v439
      %v441 = vshrl.u32 %v383, 16
      %v443 = vor.u32 %v441, %v439
      %v445 = vshll.u32 %v384, 16
      %v447 = vrot.slane %v445, 1
      %v448 = vsel %vm404, %v443, %v447
      %v449 = vshrl.u32 %v384, 16
      %v451 = vor.u32 %v449, %v447
      %v453 = vshll.u32 %v385, 16
      %v455 = vrot.slane %v453, 1
      %v456 = vsel %vm404, %v451, %v455
      %v457 = vshrl.u32 %v385, 16
      %v459 = vor.u32 %v457, %v455
      %v461 = vshll.u32 %v386, 16
      %v463 = vrot.slane %v461, 1
      %v464 = vsel %vm404, %v459, %v463
      %v465 = vshrl.u32 %v386, 16
      %v467 = vor.u32 %v465, %v463
      %v469 = vshll.u32 %v387, 16
      %v471 = vrot.slane %v469, 1
      %v472 = vsel %vm404, %v467, %v471
      %v473 = vshrl.u32 %v387, 16
      %v475 = vor.u32 %v473, %v471
      %v477 = vshll.u32 %v388, 16
      %v479 = vrot.slane %v477, 1
      %v480 = vsel %vm404, %v475, %v479
      %v481 = vshrl.u32 %v388, 16
      %v483 = vor.u32 %v481, %v479
      %v485 = vshll.u32 %v389, 16
      %v487 = vrot.slane %v485, 1
      %v488 = vsel %vm404, %v483, %v487
      %v489 = vshrl.u32 %v389, 16
      %v491 = vor.u32 %v489, %v487
      %v493 = vshll.u32 %v390, 16
      %v495 = vrot.slane %v493, 1
      %v496 = vsel %vm404, %v491, %v495
      %v497 = vshrl.u32 %v390, 16
      %v499 = vor.u32 %v497, %v495
      %v501 = vshll.u32 %v391, 16
      %v503 = vrot.slane %v501, 1
      %v504 = vsel %vm404, %v499, %v503
      %v505 = vshrl.u32 %v391, 16
      %v507 = vor.u32 %v505, %v503
      %v509 = vshll.u32 %v392, 16
      %v511 = vrot.slane %v509, 1
      %v512 = vsel %vm404, %v507, %v511
      %v513 = vshrl.u32 %v392, 16
      %v515 = vor.u32 %v513, %v511
      %v517 = vshll.u32 %v393, 16
      %v519 = vrot.slane %v517, 1
      %v520 = vsel %vm404, %v515, %v519
      %v521 = vshrl.u32 %v393, 16
      %v523 = vor.u32 %v521, %v519
      %v525 = vshll.u32 %v394, 16
      %v527 = vrot.slane %v525, 1
      %v528 = vsel %vm404, %v523, %v527
      %v529 = vshrl.u32 %v394, 16
      %v531 = vor.u32 %v529, %v527
      %v533 = vshll.u32 %v395, 16
      %v535 = vrot.slane %v533, 1
      %v536 = vsel %vm404, %v531, %v535
      %v537 = vshrl.u32 %v395, 16
      %v539 = vor.u32 %v537, %v535
      %v541 = vshll.u32 %v396, 16
      %v543 = vrot.slane %v541, 1
      %v544 = vsel %vm404, %v539, %v543
      %v545 = vshrl.u32 %v396, 16
      %v547 = vor.u32 %v545, %v543
      %v549 = vshll.u32 %v397, 16
      %v551 = vrot.slane %v549, 1
      %v552 = vsel %vm404, %v547, %v551
      %v553 = vshrl.u32 %v397, 16
      %v555 = vor.u32 %v553, %v551
      %v557 = vshll.u32 %v398, 16
      %v559 = vrot.slane %v557, 1
      %v560 = vsel %vm404, %v555, %v559
      %v561 = vshrl.u32 %v398, 16
      %v563 = vor.u32 %v561, %v559
      %v565 = vshll.u32 %v399, 16
      %v567 = vrot.slane %v565, 1
      %v568 = vsel %vm404, %v563, %v567
      %v569 = vshrl.u32 %v399, 16
      %v571 = vor.u32 %v569, %v567
      %v573 = vshll.u32 %v400, 16
      %v575 = vrot.slane %v573, 1
      %v576 = vsel %vm404, %v571, %v575
      %v577 = vshrl.u32 %v400, 16
      %v579 = vor.u32 %v577, %v575
      %v581 = vshll.u32 %v401, 16
      %v583 = vrot.slane %v581, 1
      %v584 = vsel %vm404, %v579, %v583
      %v585 = vshrl.u32 %v401, 16
      %v587 = vor.u32 %v585, %v583
      %v589 = vshll.u32 %v402, 16
      %v591 = vrot.slane %v589, 1
      %v592 = vsel %vm404, %v587, %v591
      %v593 = vshrl.u32 %v402, 16
      %v595 = vor.u32 %v593, %v591
      %v597 = vshll.u32 %v403, 16
      %v599 = vrot.slane %v597, 1
      %v600 = vsel %vm404, %v595, %v599
      %vm601 = vcmask 31744
      %v603 = vsel %vm601, %v416, 0
      %v606 = vsel %vm601, %v424, 0
      %v609 = vsel %vm601, %v432, 0
      %v612 = vsel %vm601, %v440, 0
      %v615 = vsel %vm601, %v448, 0
      %v618 = vsel %vm601, %v456, 0
      %v621 = vsel %vm601, %v464, 0
      %v624 = vsel %vm601, %v472, 0
      %v627 = vsel %vm601, %v480, 0
      %v630 = vsel %vm601, %v488, 0
      %v633 = vsel %vm601, %v496, 0
      %v636 = vsel %vm601, %v504, 0
      %v639 = vsel %vm601, %v512, 0
      %v642 = vsel %vm601, %v520, 0
      %v645 = vsel %vm601, %v528, 0
      %v648 = vsel %vm601, %v536, 0
      %v651 = vsel %vm601, %v544, 0
      %v654 = vsel %vm601, %v552, 0
      %v657 = vsel %vm601, %v560, 0
      %v660 = vsel %vm601, %v568, 0
      %v663 = vsel %vm601, %v576, 0
      %v666 = vsel %vm601, %v584, 0
      %v669 = vsel %vm601, %v592, 0
      %v672 = vsel %vm601, %v600, 0
      %vm674 = vcmask 1041408
      %v676 = vsel %vm674, %v280, 0
      %678 = vmatpush.bf16.msra.mxu0 0
      %679 = vmatpush.bf16.msra.mxu0 0
      %680 = vmatpush.bf16.msra.mxu0 0
      %681 = vmatpush.bf16.msra.mxu0 0
      %682 = vmatpush.bf16.msra.mxu0 0
      %683 = vmatpush.bf16.msra.mxu0 0
      %684 = vmatpush.bf16.msra.mxu0 0
      %685 = vmatpush.bf16.msra.mxu0 %v676
      %686 = vmatmul.bf16.gmra.mxu0 %v603
      %v687 = vpop.f32.mrf.mxu0
      %v688 = vadd.f32 0.0, %v687
      %v689 = vpop.f32.mrf.mxu0
      %v690 = vadd.f32 0.0, %v689
      %691 = vmatmul.bf16.gmra.mxu0 %v606
      %v692 = vpop.f32.mrf.mxu0
      %v693 = vpop.f32.mrf.mxu0
      %v694 = vadd.f32 0.0, %v693
      %695 = vmatmul.bf16.gmra.mxu0 %v609
      %v696 = vpop.f32.mrf.mxu0
      %v697 = vadd.f32 0.0, %v696
      %v698 = vpop.f32.mrf.mxu0
      %699 = vmatmul.bf16.gmra.mxu0 %v612
      %v700 = vpop.f32.mrf.mxu0
      %v701 = vadd.f32 0.0, %v700
      %v702 = vpop.f32.mrf.mxu0
      %v703 = vadd.f32 0.0, %v702
      %704 = vmatmul.bf16.gmra.mxu0 %v615
      %v705 = vpop.f32.mrf.mxu0
      %v706 = vpop.f32.mrf.mxu0
      %v707 = vadd.f32 0.0, %v706
      %708 = vmatmul.bf16.gmra.mxu0 %v618
      %v709 = vpop.f32.mrf.mxu0
      %v710 = vadd.f32 0.0, %v709
      %v711 = vpop.f32.mrf.mxu0
      %712 = vmatmul.bf16.gmra.mxu0 %v621
      %v713 = vpop.f32.mrf.mxu0
      %v714 = vadd.f32 0.0, %v713
      %v715 = vpop.f32.mrf.mxu0
      %v716 = vadd.f32 0.0, %v715
      %717 = vmatmul.bf16.gmra.mxu0 %v624
      %v718 = vpop.f32.mrf.mxu0
      %v719 = vpop.f32.mrf.mxu0
      %v720 = vadd.f32 0.0, %v719
      %721 = vmatmul.bf16.gmra.mxu0 %v627
      %v722 = vpop.f32.mrf.mxu0
      %v723 = vadd.f32 0.0, %v722
      %v724 = vpop.f32.mrf.mxu0
      %725 = vmatmul.bf16.gmra.mxu0 %v630
      %v726 = vpop.f32.mrf.mxu0
      %v727 = vadd.f32 0.0, %v726
      %v728 = vpop.f32.mrf.mxu0
      %v729 = vadd.f32 0.0, %v728
      %730 = vmatmul.bf16.gmra.mxu0 %v633
      %v731 = vpop.f32.mrf.mxu0
      %v732 = vpop.f32.mrf.mxu0
      %v733 = vadd.f32 0.0, %v732
      %734 = vmatmul.bf16.gmra.mxu0 %v636
      %v735 = vpop.f32.mrf.mxu0
      %v736 = vadd.f32 0.0, %v735
      %v737 = vpop.f32.mrf.mxu0
      %738 = vmatmul.bf16.gmra.mxu0 %v639
      %v739 = vpop.f32.mrf.mxu0
      %v740 = vadd.f32 0.0, %v739
      %v741 = vpop.f32.mrf.mxu0
      %v742 = vadd.f32 0.0, %v741
      %743 = vmatmul.bf16.gmra.mxu0 %v642
      %v744 = vpop.f32.mrf.mxu0
      %v745 = vpop.f32.mrf.mxu0
      %v746 = vadd.f32 0.0, %v745
      %747 = vmatmul.bf16.gmra.mxu0 %v645
      %v748 = vpop.f32.mrf.mxu0
      %v749 = vadd.f32 0.0, %v748
      %v750 = vpop.f32.mrf.mxu0
      %751 = vmatmul.bf16.gmra.mxu0 %v648
      %v752 = vpop.f32.mrf.mxu0
      %v753 = vadd.f32 0.0, %v752
      %v754 = vpop.f32.mrf.mxu0
      %v755 = vadd.f32 0.0, %v754
      %756 = vmatmul.bf16.gmra.mxu0 %v651
      %v757 = vpop.f32.mrf.mxu0
      %v758 = vpop.f32.mrf.mxu0
      %v759 = vadd.f32 0.0, %v758
      %760 = vmatmul.bf16.gmra.mxu0 %v654
      %v761 = vpop.f32.mrf.mxu0
      %v762 = vadd.f32 0.0, %v761
      %v763 = vpop.f32.mrf.mxu0
      %764 = vmatmul.bf16.gmra.mxu0 %v657
      %v765 = vpop.f32.mrf.mxu0
      %v766 = vadd.f32 0.0, %v765
      %v767 = vpop.f32.mrf.mxu0
      %v768 = vadd.f32 0.0, %v767
      %769 = vmatmul.bf16.gmra.mxu0 %v660
      %v770 = vpop.f32.mrf.mxu0
      %v771 = vpop.f32.mrf.mxu0
      %v772 = vadd.f32 0.0, %v771
      %773 = vmatmul.bf16.gmra.mxu0 %v663
      %v774 = vpop.f32.mrf.mxu0
      %v775 = vadd.f32 0.0, %v774
      %v776 = vpop.f32.mrf.mxu0
      %777 = vmatmul.bf16.gmra.mxu0 %v666
      %v778 = vpop.f32.mrf.mxu0
      %v779 = vadd.f32 0.0, %v778
      %v780 = vpop.f32.mrf.mxu0
      %v781 = vadd.f32 0.0, %v780
      %782 = vmatmul.bf16.gmra.mxu0 %v669
      %v783 = vpop.f32.mrf.mxu0
      %v784 = vpop.f32.mrf.mxu0
      %v785 = vadd.f32 0.0, %v784
      %786 = vmatmul.bf16.gmra.mxu0 %v672
      %v787 = vpop.f32.mrf.mxu0
      %v788 = vadd.f32 0.0, %v787
      %v789 = vpop.f32.mrf.mxu0
      %790 = vdwg.mxu0
      %v791 = vsel %vm601, %v379, 0
      %v793 = vsel %vm601, %v380, 0
      %v795 = vsel %vm601, %v381, 0
      %v797 = vsel %vm601, %v382, 0
      %v799 = vsel %vm601, %v383, 0
      %v801 = vsel %vm601, %v384, 0
      %v803 = vsel %vm601, %v385, 0
      %v805 = vsel %vm601, %v386, 0
      %v807 = vsel %vm601, %v387, 0
      %v809 = vsel %vm601, %v388, 0
      %v811 = vsel %vm601, %v389, 0
      %v813 = vsel %vm601, %v390, 0
      %v815 = vsel %vm601, %v391, 0
      %v817 = vsel %vm601, %v392, 0
      %v819 = vsel %vm601, %v393, 0
      %v821 = vsel %vm601, %v394, 0
      %v823 = vsel %vm601, %v395, 0
      %v825 = vsel %vm601, %v396, 0
      %v827 = vsel %vm601, %v397, 0
      %v829 = vsel %vm601, %v398, 0
      %v831 = vsel %vm601, %v399, 0
      %v833 = vsel %vm601, %v400, 0
      %v835 = vsel %vm601, %v401, 0
      %v837 = vsel %vm601, %v402, 0
      %v840 = vsel %vm674, %v278, 0
      %842 = vmatpush.bf16.msra.mxu0 0
      %843 = vmatpush.bf16.msra.mxu0 0
      %844 = vmatpush.bf16.msra.mxu0 0
      %845 = vmatpush.bf16.msra.mxu0 0
      %846 = vmatpush.bf16.msra.mxu0 0
      %847 = vmatpush.bf16.msra.mxu0 0
      %848 = vmatpush.bf16.msra.mxu0 0
      %849 = vmatpush.bf16.msra.mxu0 %v840
      %850 = vmatmul.bf16.gmra.mxu0 %v791
      %v851 = vpop.f32.mrf.mxu0
      %v852 = vadd.f32 %v688, %v851
      %v853 = vpop.f32.mrf.mxu0
      %v854 = vadd.f32 %v690, %v853
      %855 = vmatmul.bf16.gmra.mxu0 %v793
      %v856 = vpop.f32.mrf.mxu0
      %v857 = vpop.f32.mrf.mxu0
      %v858 = vadd.f32 %v694, %v857
      %859 = vmatmul.bf16.gmra.mxu0 %v795
      %v860 = vpop.f32.mrf.mxu0
      %v861 = vadd.f32 %v697, %v860
      %v862 = vpop.f32.mrf.mxu0
      %863 = vmatmul.bf16.gmra.mxu0 %v797
      %v864 = vpop.f32.mrf.mxu0
      %v865 = vadd.f32 %v701, %v864
      %v866 = vpop.f32.mrf.mxu0
      %v867 = vadd.f32 %v703, %v866
      %868 = vmatmul.bf16.gmra.mxu0 %v799
      %v869 = vpop.f32.mrf.mxu0
      %v870 = vpop.f32.mrf.mxu0
      %v871 = vadd.f32 %v707, %v870
      %872 = vmatmul.bf16.gmra.mxu0 %v801
      %v873 = vpop.f32.mrf.mxu0
      %v874 = vadd.f32 %v710, %v873
      %v875 = vpop.f32.mrf.mxu0
      %876 = vmatmul.bf16.gmra.mxu0 %v803
      %v877 = vpop.f32.mrf.mxu0
      %v878 = vadd.f32 %v714, %v877
      %v879 = vpop.f32.mrf.mxu0
      %v880 = vadd.f32 %v716, %v879
      %881 = vmatmul.bf16.gmra.mxu0 %v805
      %v882 = vpop.f32.mrf.mxu0
      %v883 = vpop.f32.mrf.mxu0
      %v884 = vadd.f32 %v720, %v883
      %885 = vmatmul.bf16.gmra.mxu0 %v807
      %v886 = vpop.f32.mrf.mxu0
      %v887 = vadd.f32 %v723, %v886
      %v888 = vpop.f32.mrf.mxu0
      %889 = vmatmul.bf16.gmra.mxu0 %v809
      %v890 = vpop.f32.mrf.mxu0
      %v891 = vadd.f32 %v727, %v890
      %v892 = vpop.f32.mrf.mxu0
      %v893 = vadd.f32 %v729, %v892
      %894 = vmatmul.bf16.gmra.mxu0 %v811
      %v895 = vpop.f32.mrf.mxu0
      %v896 = vpop.f32.mrf.mxu0
      %v897 = vadd.f32 %v733, %v896
      %898 = vmatmul.bf16.gmra.mxu0 %v813
      %v899 = vpop.f32.mrf.mxu0
      %v900 = vadd.f32 %v736, %v899
      %v901 = vpop.f32.mrf.mxu0
      %902 = vmatmul.bf16.gmra.mxu0 %v815
      %v903 = vpop.f32.mrf.mxu0
      %v904 = vadd.f32 %v740, %v903
      %v905 = vpop.f32.mrf.mxu0
      %v906 = vadd.f32 %v742, %v905
      %907 = vmatmul.bf16.gmra.mxu0 %v817
      %v908 = vpop.f32.mrf.mxu0
      %v909 = vpop.f32.mrf.mxu0
      %v910 = vadd.f32 %v746, %v909
      %911 = vmatmul.bf16.gmra.mxu0 %v819
      %v912 = vpop.f32.mrf.mxu0
      %v913 = vadd.f32 %v749, %v912
      %v914 = vpop.f32.mrf.mxu0
      %915 = vmatmul.bf16.gmra.mxu0 %v821
      %v916 = vpop.f32.mrf.mxu0
      %v917 = vadd.f32 %v753, %v916
      %v918 = vpop.f32.mrf.mxu0
      %v919 = vadd.f32 %v755, %v918
      %920 = vmatmul.bf16.gmra.mxu0 %v823
      %v921 = vpop.f32.mrf.mxu0
      %v922 = vpop.f32.mrf.mxu0
      %v923 = vadd.f32 %v759, %v922
      %924 = vmatmul.bf16.gmra.mxu0 %v825
      %v925 = vpop.f32.mrf.mxu0
      %v926 = vadd.f32 %v762, %v925
      %v927 = vpop.f32.mrf.mxu0
      %928 = vmatmul.bf16.gmra.mxu0 %v827
      %v929 = vpop.f32.mrf.mxu0
      %v930 = vadd.f32 %v766, %v929
      %v931 = vpop.f32.mrf.mxu0
      %v932 = vadd.f32 %v768, %v931
      %933 = vmatmul.bf16.gmra.mxu0 %v829
      %v934 = vpop.f32.mrf.mxu0
      %v935 = vpop.f32.mrf.mxu0
      %v936 = vadd.f32 %v772, %v935
      %937 = vmatmul.bf16.gmra.mxu0 %v831
      %v938 = vpop.f32.mrf.mxu0
      %v939 = vadd.f32 %v775, %v938
      %v940 = vpop.f32.mrf.mxu0
      %941 = vmatmul.bf16.gmra.mxu0 %v833
      %v942 = vpop.f32.mrf.mxu0
      %v943 = vadd.f32 %v779, %v942
      %v944 = vpop.f32.mrf.mxu0
      %v945 = vadd.f32 %v781, %v944
      %946 = vmatmul.bf16.gmra.mxu0 %v835
      %v947 = vpop.f32.mrf.mxu0
      %v948 = vpop.f32.mrf.mxu0
      %v949 = vadd.f32 %v785, %v948
      %950 = vmatmul.bf16.gmra.mxu0 %v837
      %v951 = vpop.f32.mrf.mxu0
      %v952 = vadd.f32 %v788, %v951
      %v953 = vpop.f32.mrf.mxu0
      %954 = vdwg.mxu0
      %s955 = scalar_lea.vmem %s1, 4
      %v956 = vld [vmem:[%s955] sm:$0x3]
      %vm957 = vcmask 1046528
      %v958 = vrot.slane %v379, 1
      %v959 = vrot.slane %v380, 1
      %v960 = vsel %vm957, %v958, %v959
      %v961 = vrot.slane %v381, 1
      %v962 = vsel %vm957, %v959, %v961
      %v963 = vrot.slane %v382, 1
      %v964 = vsel %vm957, %v961, %v963
      %v965 = vrot.slane %v383, 1
      %v966 = vsel %vm957, %v963, %v965
      %v967 = vrot.slane %v384, 1
      %v968 = vsel %vm957, %v965, %v967
      %v969 = vrot.slane %v385, 1
      %v970 = vsel %vm957, %v967, %v969
      %v971 = vrot.slane %v386, 1
      %v972 = vsel %vm957, %v969, %v971
      %v973 = vrot.slane %v387, 1
      %v974 = vsel %vm957, %v971, %v973
      %v975 = vrot.slane %v388, 1
      %v976 = vsel %vm957, %v973, %v975
      %v977 = vrot.slane %v389, 1
      %v978 = vsel %vm957, %v975, %v977
      %v979 = vrot.slane %v390, 1
      %v980 = vsel %vm957, %v977, %v979
      %v981 = vrot.slane %v391, 1
      %v982 = vsel %vm957, %v979, %v981
      %v983 = vrot.slane %v392, 1
      %v984 = vsel %vm957, %v981, %v983
      %v985 = vrot.slane %v393, 1
      %v986 = vsel %vm957, %v983, %v985
      %v987 = vrot.slane %v394, 1
      %v988 = vsel %vm957, %v985, %v987
      %v989 = vrot.slane %v395, 1
      %v990 = vsel %vm957, %v987, %v989
      %v991 = vrot.slane %v396, 1
      %v992 = vsel %vm957, %v989, %v991
      %v993 = vrot.slane %v397, 1
      %v994 = vsel %vm957, %v991, %v993
      %v995 = vrot.slane %v398, 1
      %v996 = vsel %vm957, %v993, %v995
      %v997 = vrot.slane %v399, 1
      %v998 = vsel %vm957, %v995, %v997
      %v999 = vrot.slane %v400, 1
      %v1000 = vsel %vm957, %v997, %v999
      %v1001 = vrot.slane %v401, 1
      %v1002 = vsel %vm957, %v999, %v1001
      %v1003 = vrot.slane %v402, 1
      %v1004 = vsel %vm957, %v1001, %v1003
      %v1005 = vrot.slane %v403, 1
      %v1006 = vsel %vm957, %v1003, %v1005
      %v1008 = vsel %vm601, %v960, 0
      %v1011 = vsel %vm601, %v962, 0
      %v1014 = vsel %vm601, %v964, 0
      %v1017 = vsel %vm601, %v966, 0
      %v1020 = vsel %vm601, %v968, 0
      %v1023 = vsel %vm601, %v970, 0
      %v1026 = vsel %vm601, %v972, 0
      %v1029 = vsel %vm601, %v974, 0
      %v1032 = vsel %vm601, %v976, 0
      %v1035 = vsel %vm601, %v978, 0
      %v1038 = vsel %vm601, %v980, 0
      %v1041 = vsel %vm601, %v982, 0
      %v1044 = vsel %vm601, %v984, 0
      %v1047 = vsel %vm601, %v986, 0
      %v1050 = vsel %vm601, %v988, 0
      %v1053 = vsel %vm601, %v990, 0
      %v1056 = vsel %vm601, %v992, 0
      %v1059 = vsel %vm601, %v994, 0
      %v1062 = vsel %vm601, %v996, 0
      %v1065 = vsel %vm601, %v998, 0
      %v1068 = vsel %vm601, %v1000, 0
      %v1071 = vsel %vm601, %v1002, 0
      %v1074 = vsel %vm601, %v1004, 0
      %v1077 = vsel %vm601, %v1006, 0
      %v1080 = vsel %vm674, %v956, 0
      %1082 = vmatpush.bf16.msra.mxu0 0
      %1083 = vmatpush.bf16.msra.mxu0 0
      %1084 = vmatpush.bf16.msra.mxu0 0
      %1085 = vmatpush.bf16.msra.mxu0 0
      %1086 = vmatpush.bf16.msra.mxu0 0
      %1087 = vmatpush.bf16.msra.mxu0 0
      %1088 = vmatpush.bf16.msra.mxu0 0
      %1089 = vmatpush.bf16.msra.mxu0 %v1080
      %1090 = vmatmul.bf16.gmra.mxu0 %v1008
      %v1091 = vpop.f32.mrf.mxu0
      %v1092 = vadd.f32 0.0, %v1091
      %v1093 = vpop.f32.mrf.mxu0
      %v1094 = vadd.f32 0.0, %v1093
      %1095 = vmatmul.bf16.gmra.mxu0 %v1011
      %v1096 = vpop.f32.mrf.mxu0
      %v1097 = vpop.f32.mrf.mxu0
      %v1098 = vadd.f32 0.0, %v1097
      %1099 = vmatmul.bf16.gmra.mxu0 %v1014
      %v1100 = vpop.f32.mrf.mxu0
      %v1101 = vadd.f32 0.0, %v1100
      %v1102 = vpop.f32.mrf.mxu0
      %1103 = vmatmul.bf16.gmra.mxu0 %v1017
      %v1104 = vpop.f32.mrf.mxu0
      %v1105 = vadd.f32 0.0, %v1104
      %v1106 = vpop.f32.mrf.mxu0
      %v1107 = vadd.f32 0.0, %v1106
      %1108 = vmatmul.bf16.gmra.mxu0 %v1020
      %v1109 = vpop.f32.mrf.mxu0
      %v1110 = vpop.f32.mrf.mxu0
      %v1111 = vadd.f32 0.0, %v1110
      %1112 = vmatmul.bf16.gmra.mxu0 %v1023
      %v1113 = vpop.f32.mrf.mxu0
      %v1114 = vadd.f32 0.0, %v1113
      %v1115 = vpop.f32.mrf.mxu0
      %1116 = vmatmul.bf16.gmra.mxu0 %v1026
      %v1117 = vpop.f32.mrf.mxu0
      %v1118 = vadd.f32 0.0, %v1117
      %v1119 = vpop.f32.mrf.mxu0
      %v1120 = vadd.f32 0.0, %v1119
      %1121 = vmatmul.bf16.gmra.mxu0 %v1029
      %v1122 = vpop.f32.mrf.mxu0
      %v1123 = vpop.f32.mrf.mxu0
      %v1124 = vadd.f32 0.0, %v1123
      %1125 = vmatmul.bf16.gmra.mxu0 %v1032
      %v1126 = vpop.f32.mrf.mxu0
      %v1127 = vadd.f32 0.0, %v1126
      %v1128 = vpop.f32.mrf.mxu0
      %1129 = vmatmul.bf16.gmra.mxu0 %v1035
      %v1130 = vpop.f32.mrf.mxu0
      %v1131 = vadd.f32 0.0, %v1130
      %v1132 = vpop.f32.mrf.mxu0
      %v1133 = vadd.f32 0.0, %v1132
      %1134 = vmatmul.bf16.gmra.mxu0 %v1038
      %v1135 = vpop.f32.mrf.mxu0
      %v1136 = vpop.f32.mrf.mxu0
      %v1137 = vadd.f32 0.0, %v1136
      %1138 = vmatmul.bf16.gmra.mxu0 %v1041
      %v1139 = vpop.f32.mrf.mxu0
      %v1140 = vadd.f32 0.0, %v1139
      %v1141 = vpop.f32.mrf.mxu0
      %1142 = vmatmul.bf16.gmra.mxu0 %v1044
      %v1143 = vpop.f32.mrf.mxu0
      %v1144 = vadd.f32 0.0, %v1143
      %v1145 = vpop.f32.mrf.mxu0
      %v1146 = vadd.f32 0.0, %v1145
      %1147 = vmatmul.bf16.gmra.mxu0 %v1047
      %v1148 = vpop.f32.mrf.mxu0
      %v1149 = vpop.f32.mrf.mxu0
      %v1150 = vadd.f32 0.0, %v1149
      %1151 = vmatmul.bf16.gmra.mxu0 %v1050
      %v1152 = vpop.f32.mrf.mxu0
      %v1153 = vadd.f32 0.0, %v1152
      %v1154 = vpop.f32.mrf.mxu0
      %1155 = vmatmul.bf16.gmra.mxu0 %v1053
      %v1156 = vpop.f32.mrf.mxu0
      %v1157 = vadd.f32 0.0, %v1156
      %v1158 = vpop.f32.mrf.mxu0
      %v1159 = vadd.f32 0.0, %v1158
      %1160 = vmatmul.bf16.gmra.mxu0 %v1056
      %v1161 = vpop.f32.mrf.mxu0
      %v1162 = vpop.f32.mrf.mxu0
      %v1163 = vadd.f32 0.0, %v1162
      %1164 = vmatmul.bf16.gmra.mxu0 %v1059
      %v1165 = vpop.f32.mrf.mxu0
      %v1166 = vadd.f32 0.0, %v1165
      %v1167 = vpop.f32.mrf.mxu0
      %1168 = vmatmul.bf16.gmra.mxu0 %v1062
      %v1169 = vpop.f32.mrf.mxu0
      %v1170 = vadd.f32 0.0, %v1169
      %v1171 = vpop.f32.mrf.mxu0
      %v1172 = vadd.f32 0.0, %v1171
      %1173 = vmatmul.bf16.gmra.mxu0 %v1065
      %v1174 = vpop.f32.mrf.mxu0
      %v1175 = vpop.f32.mrf.mxu0
      %v1176 = vadd.f32 0.0, %v1175
      %1177 = vmatmul.bf16.gmra.mxu0 %v1068
      %v1178 = vpop.f32.mrf.mxu0
      %v1179 = vadd.f32 0.0, %v1178
      %v1180 = vpop.f32.mrf.mxu0
      %1181 = vmatmul.bf16.gmra.mxu0 %v1071
      %v1182 = vpop.f32.mrf.mxu0
      %v1183 = vadd.f32 0.0, %v1182
      %v1184 = vpop.f32.mrf.mxu0
      %v1185 = vadd.f32 0.0, %v1184
      %1186 = vmatmul.bf16.gmra.mxu0 %v1074
      %v1187 = vpop.f32.mrf.mxu0
      %v1188 = vpop.f32.mrf.mxu0
      %v1189 = vadd.f32 0.0, %v1188
      %1190 = vmatmul.bf16.gmra.mxu0 %v1077
      %v1191 = vpop.f32.mrf.mxu0
      %v1192 = vadd.f32 0.0, %v1191
      %v1193 = vpop.f32.mrf.mxu0
      %1194 = vdwg.mxu0
      %v1195 = vadd.f32 %v852, %v1092
      %v1196 = vadd.f32 %v854, %v1094
      %v1197 = vadd.f32 %v858, %v1098
      %v1198 = vadd.f32 %v861, %v1101
      %v1199 = vadd.f32 %v865, %v1105
      %v1200 = vadd.f32 %v867, %v1107
      %v1201 = vadd.f32 %v871, %v1111
      %v1202 = vadd.f32 %v874, %v1114
      %v1203 = vadd.f32 %v878, %v1118
      %v1204 = vadd.f32 %v880, %v1120
      %v1205 = vadd.f32 %v884, %v1124
      %v1206 = vadd.f32 %v887, %v1127
      %v1207 = vadd.f32 %v891, %v1131
      %v1208 = vadd.f32 %v893, %v1133
      %v1209 = vadd.f32 %v897, %v1137
      %v1210 = vadd.f32 %v900, %v1140
      %v1211 = vadd.f32 %v904, %v1144
      %v1212 = vadd.f32 %v906, %v1146
      %v1213 = vadd.f32 %v910, %v1150
      %v1214 = vadd.f32 %v913, %v1153
      %v1215 = vadd.f32 %v917, %v1157
      %v1216 = vadd.f32 %v919, %v1159
      %v1217 = vadd.f32 %v923, %v1163
      %v1218 = vadd.f32 %v926, %v1166
      %v1219 = vadd.f32 %v930, %v1170
      %v1220 = vadd.f32 %v932, %v1172
      %v1221 = vadd.f32 %v936, %v1176
      %v1222 = vadd.f32 %v939, %v1179
      %v1223 = vadd.f32 %v943, %v1183
      %v1224 = vadd.f32 %v945, %v1185
      %v1225 = vadd.f32 %v949, %v1189
      %v1226 = vadd.f32 %v952, %v1192
      %s1227 = scalar_lea.vmem %s1, 6
      %v1228 = vld [vmem:[%s1227] sm:$0x3]
      %v1231 = vunpack.c.l.b16 %v272
      %v1232 = vunpack.c.l.b16 %v273
      %v1233 = vpack.c.b16 %v334, %v333
      %v1234 = vpack.c.b16 %v336, %v335
      %v1235 = vpack.c.b16 %v338, %v337
      %v1236 = vpack.c.b16 %v340, %v339
      %v1237 = vpack.c.b16 %v342, %v341
      %v1238 = vpack.c.b16 %v344, %v343
      %v1239 = vpack.c.b16 %v346, %v345
      %v1240 = vpack.c.b16 %v348, %v347
      %v1241 = vpack.c.b16 %v350, %v349
      %v1242 = vpack.c.b16 %v352, %v351
      %v1243 = vpack.c.b16 %v354, %v353
      %v1244 = vpack.c.b16 %v356, %v355
      %v1245 = vpack.c.b16 %v358, %v357
      %v1246 = vpack.c.b16 %v360, %v359
      %v1247 = vpack.c.b16 %v362, %v361
      %v1248 = vpack.c.b16 %v364, %v363
      %v1249 = vpack.c.b16 %v366, %v365
      %v1250 = vpack.c.b16 %v368, %v367
      %v1251 = vpack.c.b16 %v370, %v369
      %v1252 = vpack.c.b16 %v372, %v371
      %v1253 = vpack.c.b16 %v374, %v373
      %v1254 = vpack.c.b16 %v376, %v375
      %v1255 = vpack.c.b16 %v378, %v377
      %v1256 = vpack.c.b16 %v1232, %v1231
      %v1258 = vsel %vm601, %v1233, 0
      %v1261 = vsel %vm601, %v1234, 0
      %v1264 = vsel %vm601, %v1235, 0
      %v1267 = vsel %vm601, %v1236, 0
      %v1270 = vsel %vm601, %v1237, 0
      %v1273 = vsel %vm601, %v1238, 0
      %v1276 = vsel %vm601, %v1239, 0
      %v1279 = vsel %vm601, %v1240, 0
      %v1282 = vsel %vm601, %v1241, 0
      %v1285 = vsel %vm601, %v1242, 0
      %v1288 = vsel %vm601, %v1243, 0
      %v1291 = vsel %vm601, %v1244, 0
      %v1294 = vsel %vm601, %v1245, 0
      %v1297 = vsel %vm601, %v1246, 0
      %v1300 = vsel %vm601, %v1247, 0
      %v1303 = vsel %vm601, %v1248, 0
      %v1306 = vsel %vm601, %v1249, 0
      %v1309 = vsel %vm601, %v1250, 0
      %v1312 = vsel %vm601, %v1251, 0
      %v1315 = vsel %vm601, %v1252, 0
      %v1318 = vsel %vm601, %v1253, 0
      %v1321 = vsel %vm601, %v1254, 0
      %v1324 = vsel %vm601, %v1255, 0
      %v1327 = vsel %vm601, %v1256, 0
      %v1330 = vsel %vm674, %v1228, 0
      %1332 = vmatpush.bf16.msra.mxu0 0
      %1333 = vmatpush.bf16.msra.mxu0 0
      %1334 = vmatpush.bf16.msra.mxu0 0
      %1335 = vmatpush.bf16.msra.mxu0 0
      %1336 = vmatpush.bf16.msra.mxu0 0
      %1337 = vmatpush.bf16.msra.mxu0 0
      %1338 = vmatpush.bf16.msra.mxu0 0
      %1339 = vmatpush.bf16.msra.mxu0 %v1330
      %1340 = vmatmul.bf16.gmra.mxu0 %v1258
      %v1341 = vpop.f32.mrf.mxu0
      %v1342 = vadd.f32 0.0, %v1341
      %v1343 = vpop.f32.mrf.mxu0
      %v1344 = vadd.f32 0.0, %v1343
      %1345 = vmatmul.bf16.gmra.mxu0 %v1261
      %v1346 = vpop.f32.mrf.mxu0
      %v1347 = vpop.f32.mrf.mxu0
      %v1348 = vadd.f32 0.0, %v1347
      %1349 = vmatmul.bf16.gmra.mxu0 %v1264
      %v1350 = vpop.f32.mrf.mxu0
      %v1351 = vadd.f32 0.0, %v1350
      %v1352 = vpop.f32.mrf.mxu0
      %1353 = vmatmul.bf16.gmra.mxu0 %v1267
      %v1354 = vpop.f32.mrf.mxu0
      %v1355 = vadd.f32 0.0, %v1354
      %v1356 = vpop.f32.mrf.mxu0
      %v1357 = vadd.f32 0.0, %v1356
      %1358 = vmatmul.bf16.gmra.mxu0 %v1270
      %v1359 = vpop.f32.mrf.mxu0
      %v1360 = vpop.f32.mrf.mxu0
      %v1361 = vadd.f32 0.0, %v1360
      %1362 = vmatmul.bf16.gmra.mxu0 %v1273
      %v1363 = vpop.f32.mrf.mxu0
      %v1364 = vadd.f32 0.0, %v1363
      %v1365 = vpop.f32.mrf.mxu0
      %1366 = vmatmul.bf16.gmra.mxu0 %v1276
      %v1367 = vpop.f32.mrf.mxu0
      %v1368 = vadd.f32 0.0, %v1367
      %v1369 = vpop.f32.mrf.mxu0
      %v1370 = vadd.f32 0.0, %v1369
      %1371 = vmatmul.bf16.gmra.mxu0 %v1279
      %v1372 = vpop.f32.mrf.mxu0
      %v1373 = vpop.f32.mrf.mxu0
      %v1374 = vadd.f32 0.0, %v1373
      %1375 = vmatmul.bf16.gmra.mxu0 %v1282
      %v1376 = vpop.f32.mrf.mxu0
      %v1377 = vadd.f32 0.0, %v1376
      %v1378 = vpop.f32.mrf.mxu0
      %1379 = vmatmul.bf16.gmra.mxu0 %v1285
      %v1380 = vpop.f32.mrf.mxu0
      %v1381 = vadd.f32 0.0, %v1380
      %v1382 = vpop.f32.mrf.mxu0
      %v1383 = vadd.f32 0.0, %v1382
      %1384 = vmatmul.bf16.gmra.mxu0 %v1288
      %v1385 = vpop.f32.mrf.mxu0
      %v1386 = vpop.f32.mrf.mxu0
      %v1387 = vadd.f32 0.0, %v1386
      %1388 = vmatmul.bf16.gmra.mxu0 %v1291
      %v1389 = vpop.f32.mrf.mxu0
      %v1390 = vadd.f32 0.0, %v1389
      %v1391 = vpop.f32.mrf.mxu0
      %1392 = vmatmul.bf16.gmra.mxu0 %v1294
      %v1393 = vpop.f32.mrf.mxu0
      %v1394 = vadd.f32 0.0, %v1393
      %v1395 = vpop.f32.mrf.mxu0
      %v1396 = vadd.f32 0.0, %v1395
      %1397 = vmatmul.bf16.gmra.mxu0 %v1297
      %v1398 = vpop.f32.mrf.mxu0
      %v1399 = vpop.f32.mrf.mxu0
      %v1400 = vadd.f32 0.0, %v1399
      %1401 = vmatmul.bf16.gmra.mxu0 %v1300
      %v1402 = vpop.f32.mrf.mxu0
      %v1403 = vadd.f32 0.0, %v1402
      %v1404 = vpop.f32.mrf.mxu0
      %1405 = vmatmul.bf16.gmra.mxu0 %v1303
      %v1406 = vpop.f32.mrf.mxu0
      %v1407 = vadd.f32 0.0, %v1406
      %v1408 = vpop.f32.mrf.mxu0
      %v1409 = vadd.f32 0.0, %v1408
      %1410 = vmatmul.bf16.gmra.mxu0 %v1306
      %v1411 = vpop.f32.mrf.mxu0
      %v1412 = vpop.f32.mrf.mxu0
      %v1413 = vadd.f32 0.0, %v1412
      %1414 = vmatmul.bf16.gmra.mxu0 %v1309
      %v1415 = vpop.f32.mrf.mxu0
      %v1416 = vadd.f32 0.0, %v1415
      %v1417 = vpop.f32.mrf.mxu0
      %1418 = vmatmul.bf16.gmra.mxu0 %v1312
      %v1419 = vpop.f32.mrf.mxu0
      %v1420 = vadd.f32 0.0, %v1419
      %v1421 = vpop.f32.mrf.mxu0
      %v1422 = vadd.f32 0.0, %v1421
      %1423 = vmatmul.bf16.gmra.mxu0 %v1315
      %v1424 = vpop.f32.mrf.mxu0
      %v1425 = vpop.f32.mrf.mxu0
      %v1426 = vadd.f32 0.0, %v1425
      %1427 = vmatmul.bf16.gmra.mxu0 %v1318
      %v1428 = vpop.f32.mrf.mxu0
      %v1429 = vadd.f32 0.0, %v1428
      %v1430 = vpop.f32.mrf.mxu0
      %1431 = vmatmul.bf16.gmra.mxu0 %v1321
      %v1432 = vpop.f32.mrf.mxu0
      %v1433 = vadd.f32 0.0, %v1432
      %v1434 = vpop.f32.mrf.mxu0
      %v1435 = vadd.f32 0.0, %v1434
      %1436 = vmatmul.bf16.gmra.mxu0 %v1324
      %v1437 = vpop.f32.mrf.mxu0
      %v1438 = vpop.f32.mrf.mxu0
      %v1439 = vadd.f32 0.0, %v1438
      %1440 = vmatmul.bf16.gmra.mxu0 %v1327
      %v1441 = vpop.f32.mrf.mxu0
      %v1442 = vadd.f32 0.0, %v1441
      %v1443 = vpop.f32.mrf.mxu0
      %1444 = vdwg.mxu0
      %v1445 = vadd.f32 %v1195, %v1342
      %v1446 = vadd.f32 %v1196, %v1344
      %v1447 = vadd.f32 %v1197, %v1348
      %v1448 = vadd.f32 %v1198, %v1351
      %v1449 = vadd.f32 %v1199, %v1355
      %v1450 = vadd.f32 %v1200, %v1357
      %v1451 = vadd.f32 %v1201, %v1361
      %v1452 = vadd.f32 %v1202, %v1364
      %v1453 = vadd.f32 %v1203, %v1368
      %v1454 = vadd.f32 %v1204, %v1370
      %v1455 = vadd.f32 %v1205, %v1374
      %v1456 = vadd.f32 %v1206, %v1377
      %v1457 = vadd.f32 %v1207, %v1381
      %v1458 = vadd.f32 %v1208, %v1383
      %v1459 = vadd.f32 %v1209, %v1387
      %v1460 = vadd.f32 %v1210, %v1390
      %v1461 = vadd.f32 %v1211, %v1394
      %v1462 = vadd.f32 %v1212, %v1396
      %v1463 = vadd.f32 %v1213, %v1400
      %v1464 = vadd.f32 %v1214, %v1403
      %v1465 = vadd.f32 %v1215, %v1407
      %v1466 = vadd.f32 %v1216, %v1409
      %v1467 = vadd.f32 %v1217, %v1413
      %v1468 = vadd.f32 %v1218, %v1416
      %v1469 = vadd.f32 %v1219, %v1420
      %v1470 = vadd.f32 %v1220, %v1422
      %v1471 = vadd.f32 %v1221, %v1426
      %v1472 = vadd.f32 %v1222, %v1429
      %v1473 = vadd.f32 %v1223, %v1433
      %v1474 = vadd.f32 %v1224, %v1435
      %v1475 = vadd.f32 %v1225, %v1439
      %v1476 = vadd.f32 %v1226, %v1442
      %s1477 = scalar_lea.vmem %s1, 8
      %v1478 = vld [vmem:[%s1477] sm:$0x3]
      %v1480 = vunpack.c.l.b16 %v274
      %v1481 = vpack.c.b16 %v1480, %v1480
      %v1482 = vshrl.u32 %v1233, 16
      %v1484 = vshll.u32 %v1233, 16
      %v1486 = vrot.slane %v1484, 1
      %v1487 = vor.u32 %v1482, %v1486
      %v1488 = vshll.u32 %v1234, 16
      %v1490 = vrot.slane %v1488, 1
      %v1491 = vsel %vm404, %v1487, %v1490
      %v1492 = vshrl.u32 %v1234, 16
      %v1494 = vor.u32 %v1492, %v1490
      %v1495 = vshll.u32 %v1235, 16
      %v1497 = vrot.slane %v1495, 1
      %v1498 = vsel %vm404, %v1494, %v1497
      %v1499 = vshrl.u32 %v1235, 16
      %v1501 = vor.u32 %v1499, %v1497
      %v1502 = vshll.u32 %v1236, 16
      %v1504 = vrot.slane %v1502, 1
      %v1505 = vsel %vm404, %v1501, %v1504
      %v1506 = vshrl.u32 %v1236, 16
      %v1508 = vor.u32 %v1506, %v1504
      %v1509 = vshll.u32 %v1237, 16
      %v1511 = vrot.slane %v1509, 1
      %v1512 = vsel %vm404, %v1508, %v1511
      %v1513 = vshrl.u32 %v1237, 16
      %v1515 = vor.u32 %v1513, %v1511
      %v1516 = vshll.u32 %v1238, 16
      %v1518 = vrot.slane %v1516, 1
      %v1519 = vsel %vm404, %v1515, %v1518
      %v1520 = vshrl.u32 %v1238, 16
      %v1522 = vor.u32 %v1520, %v1518
      %v1523 = vshll.u32 %v1239, 16
      %v1525 = vrot.slane %v1523, 1
      %v1526 = vsel %vm404, %v1522, %v1525
      %v1527 = vshrl.u32 %v1239, 16
      %v1529 = vor.u32 %v1527, %v1525
      %v1530 = vshll.u32 %v1240, 16
      %v1532 = vrot.slane %v1530, 1
      %v1533 = vsel %vm404, %v1529, %v1532
      %v1534 = vshrl.u32 %v1240, 16
      %v1536 = vor.u32 %v1534, %v1532
      %v1537 = vshll.u32 %v1241, 16
      %v1539 = vrot.slane %v1537, 1
      %v1540 = vsel %vm404, %v1536, %v1539
      %v1541 = vshrl.u32 %v1241, 16
      %v1543 = vor.u32 %v1541, %v1539
      %v1544 = vshll.u32 %v1242, 16
      %v1546 = vrot.slane %v1544, 1
      %v1547 = vsel %vm404, %v1543, %v1546
      %v1548 = vshrl.u32 %v1242, 16
      %v1550 = vor.u32 %v1548, %v1546
      %v1551 = vshll.u32 %v1243, 16
      %v1553 = vrot.slane %v1551, 1
      %v1554 = vsel %vm404, %v1550, %v1553
      %v1555 = vshrl.u32 %v1243, 16
      %v1557 = vor.u32 %v1555, %v1553
      %v1558 = vshll.u32 %v1244, 16
      %v1560 = vrot.slane %v1558, 1
      %v1561 = vsel %vm404, %v1557, %v1560
      %v1562 = vshrl.u32 %v1244, 16
      %v1564 = vor.u32 %v1562, %v1560
      %v1565 = vshll.u32 %v1245, 16
      %v1567 = vrot.slane %v1565, 1
      %v1568 = vsel %vm404, %v1564, %v1567
      %v1569 = vshrl.u32 %v1245, 16
      %v1571 = vor.u32 %v1569, %v1567
      %v1572 = vshll.u32 %v1246, 16
      %v1574 = vrot.slane %v1572, 1
      %v1575 = vsel %vm404, %v1571, %v1574
      %v1576 = vshrl.u32 %v1246, 16
      %v1578 = vor.u32 %v1576, %v1574
      %v1579 = vshll.u32 %v1247, 16
      %v1581 = vrot.slane %v1579, 1
      %v1582 = vsel %vm404, %v1578, %v1581
      %v1583 = vshrl.u32 %v1247, 16
      %v1585 = vor.u32 %v1583, %v1581
      %v1586 = vshll.u32 %v1248, 16
      %v1588 = vrot.slane %v1586, 1
      %v1589 = vsel %vm404, %v1585, %v1588
      %v1590 = vshrl.u32 %v1248, 16
      %v1592 = vor.u32 %v1590, %v1588
      %v1593 = vshll.u32 %v1249, 16
      %v1595 = vrot.slane %v1593, 1
      %v1596 = vsel %vm404, %v1592, %v1595
      %v1597 = vshrl.u32 %v1249, 16
      %v1599 = vor.u32 %v1597, %v1595
      %v1600 = vshll.u32 %v1250, 16
      %v1602 = vrot.slane %v1600, 1
      %v1603 = vsel %vm404, %v1599, %v1602
      %v1604 = vshrl.u32 %v1250, 16
      %v1606 = vor.u32 %v1604, %v1602
      %v1607 = vshll.u32 %v1251, 16
      %v1609 = vrot.slane %v1607, 1
      %v1610 = vsel %vm404, %v1606, %v1609
      %v1611 = vshrl.u32 %v1251, 16
      %v1613 = vor.u32 %v1611, %v1609
      %v1614 = vshll.u32 %v1252, 16
      %v1616 = vrot.slane %v1614, 1
      %v1617 = vsel %vm404, %v1613, %v1616
      %v1618 = vshrl.u32 %v1252, 16
      %v1620 = vor.u32 %v1618, %v1616
      %v1621 = vshll.u32 %v1253, 16
      %v1623 = vrot.slane %v1621, 1
      %v1624 = vsel %vm404, %v1620, %v1623
      %v1625 = vshrl.u32 %v1253, 16
      %v1627 = vor.u32 %v1625, %v1623
      %v1628 = vshll.u32 %v1254, 16
      %v1630 = vrot.slane %v1628, 1
      %v1631 = vsel %vm404, %v1627, %v1630
      %v1632 = vshrl.u32 %v1254, 16
      %v1634 = vor.u32 %v1632, %v1630
      %v1635 = vshll.u32 %v1255, 16
      %v1637 = vrot.slane %v1635, 1
      %v1638 = vsel %vm404, %v1634, %v1637
      %v1639 = vshrl.u32 %v1255, 16
      %v1641 = vor.u32 %v1639, %v1637
      %v1642 = vshll.u32 %v1256, 16
      %v1644 = vrot.slane %v1642, 1
      %v1645 = vsel %vm404, %v1641, %v1644
      %v1646 = vshrl.u32 %v1256, 16
      %v1648 = vor.u32 %v1646, %v1644
      %v1650 = vshll.u32 %v1481, 16
      %v1652 = vrot.slane %v1650, 1
      %v1653 = vsel %vm404, %v1648, %v1652
      %v1655 = vsel %vm601, %v1491, 0
      %v1658 = vsel %vm601, %v1498, 0
      %v1661 = vsel %vm601, %v1505, 0
      %v1664 = vsel %vm601, %v1512, 0
      %v1667 = vsel %vm601, %v1519, 0
      %v1670 = vsel %vm601, %v1526, 0
      %v1673 = vsel %vm601, %v1533, 0
      %v1676 = vsel %vm601, %v1540, 0
      %v1679 = vsel %vm601, %v1547, 0
      %v1682 = vsel %vm601, %v1554, 0
      %v1685 = vsel %vm601, %v1561, 0
      %v1688 = vsel %vm601, %v1568, 0
      %v1691 = vsel %vm601, %v1575, 0
      %v1694 = vsel %vm601, %v1582, 0
      %v1697 = vsel %vm601, %v1589, 0
      %v1700 = vsel %vm601, %v1596, 0
      %v1703 = vsel %vm601, %v1603, 0
      %v1706 = vsel %vm601, %v1610, 0
      %v1709 = vsel %vm601, %v1617, 0
      %v1712 = vsel %vm601, %v1624, 0
      %v1715 = vsel %vm601, %v1631, 0
      %v1718 = vsel %vm601, %v1638, 0
      %v1721 = vsel %vm601, %v1645, 0
      %v1724 = vsel %vm601, %v1653, 0
      %v1727 = vsel %vm674, %v1478, 0
      %1729 = vmatpush.bf16.msra.mxu0 0
      %1730 = vmatpush.bf16.msra.mxu0 0
      %1731 = vmatpush.bf16.msra.mxu0 0
      %1732 = vmatpush.bf16.msra.mxu0 0
      %1733 = vmatpush.bf16.msra.mxu0 0
      %1734 = vmatpush.bf16.msra.mxu0 0
      %1735 = vmatpush.bf16.msra.mxu0 0
      %1736 = vmatpush.bf16.msra.mxu0 %v1727
      %1737 = vmatmul.bf16.gmra.mxu0 %v1655
      %v1738 = vpop.f32.mrf.mxu0
      %v1739 = vadd.f32 0.0, %v1738
      %v1740 = vpop.f32.mrf.mxu0
      %v1741 = vadd.f32 0.0, %v1740
      %1742 = vmatmul.bf16.gmra.mxu0 %v1658
      %v1743 = vpop.f32.mrf.mxu0
      %v1744 = vpop.f32.mrf.mxu0
      %v1745 = vadd.f32 0.0, %v1744
      %1746 = vmatmul.bf16.gmra.mxu0 %v1661
      %v1747 = vpop.f32.mrf.mxu0
      %v1748 = vadd.f32 0.0, %v1747
      %v1749 = vpop.f32.mrf.mxu0
      %1750 = vmatmul.bf16.gmra.mxu0 %v1664
      %v1751 = vpop.f32.mrf.mxu0
      %v1752 = vadd.f32 0.0, %v1751
      %v1753 = vpop.f32.mrf.mxu0
      %v1754 = vadd.f32 0.0, %v1753
      %1755 = vmatmul.bf16.gmra.mxu0 %v1667
      %v1756 = vpop.f32.mrf.mxu0
      %v1757 = vpop.f32.mrf.mxu0
      %v1758 = vadd.f32 0.0, %v1757
      %1759 = vmatmul.bf16.gmra.mxu0 %v1670
      %v1760 = vpop.f32.mrf.mxu0
      %v1761 = vadd.f32 0.0, %v1760
      %v1762 = vpop.f32.mrf.mxu0
      %1763 = vmatmul.bf16.gmra.mxu0 %v1673
      %v1764 = vpop.f32.mrf.mxu0
      %v1765 = vadd.f32 0.0, %v1764
      %v1766 = vpop.f32.mrf.mxu0
      %v1767 = vadd.f32 0.0, %v1766
      %1768 = vmatmul.bf16.gmra.mxu0 %v1676
      %v1769 = vpop.f32.mrf.mxu0
      %v1770 = vpop.f32.mrf.mxu0
      %v1771 = vadd.f32 0.0, %v1770
      %1772 = vmatmul.bf16.gmra.mxu0 %v1679
      %v1773 = vpop.f32.mrf.mxu0
      %v1774 = vadd.f32 0.0, %v1773
      %v1775 = vpop.f32.mrf.mxu0
      %1776 = vmatmul.bf16.gmra.mxu0 %v1682
      %v1777 = vpop.f32.mrf.mxu0
      %v1778 = vadd.f32 0.0, %v1777
      %v1779 = vpop.f32.mrf.mxu0
      %v1780 = vadd.f32 0.0, %v1779
      %1781 = vmatmul.bf16.gmra.mxu0 %v1685
      %v1782 = vpop.f32.mrf.mxu0
      %v1783 = vpop.f32.mrf.mxu0
      %v1784 = vadd.f32 0.0, %v1783
      %1785 = vmatmul.bf16.gmra.mxu0 %v1688
      %v1786 = vpop.f32.mrf.mxu0
      %v1787 = vadd.f32 0.0, %v1786
      %v1788 = vpop.f32.mrf.mxu0
      %1789 = vmatmul.bf16.gmra.mxu0 %v1691
      %v1790 = vpop.f32.mrf.mxu0
      %v1791 = vadd.f32 0.0, %v1790
      %v1792 = vpop.f32.mrf.mxu0
      %v1793 = vadd.f32 0.0, %v1792
      %1794 = vmatmul.bf16.gmra.mxu0 %v1694
      %v1795 = vpop.f32.mrf.mxu0
      %v1796 = vpop.f32.mrf.mxu0
      %v1797 = vadd.f32 0.0, %v1796
      %1798 = vmatmul.bf16.gmra.mxu0 %v1697
      %v1799 = vpop.f32.mrf.mxu0
      %v1800 = vadd.f32 0.0, %v1799
      %v1801 = vpop.f32.mrf.mxu0
      %1802 = vmatmul.bf16.gmra.mxu0 %v1700
      %v1803 = vpop.f32.mrf.mxu0
      %v1804 = vadd.f32 0.0, %v1803
      %v1805 = vpop.f32.mrf.mxu0
      %v1806 = vadd.f32 0.0, %v1805
      %1807 = vmatmul.bf16.gmra.mxu0 %v1703
      %v1808 = vpop.f32.mrf.mxu0
      %v1809 = vpop.f32.mrf.mxu0
      %v1810 = vadd.f32 0.0, %v1809
      %1811 = vmatmul.bf16.gmra.mxu0 %v1706
      %v1812 = vpop.f32.mrf.mxu0
      %v1813 = vadd.f32 0.0, %v1812
      %v1814 = vpop.f32.mrf.mxu0
      %1815 = vmatmul.bf16.gmra.mxu0 %v1709
      %v1816 = vpop.f32.mrf.mxu0
      %v1817 = vadd.f32 0.0, %v1816
      %v1818 = vpop.f32.mrf.mxu0
      %v1819 = vadd.f32 0.0, %v1818
      %1820 = vmatmul.bf16.gmra.mxu0 %v1712
      %v1821 = vpop.f32.mrf.mxu0
      %v1822 = vpop.f32.mrf.mxu0
      %v1823 = vadd.f32 0.0, %v1822
      %1824 = vmatmul.bf16.gmra.mxu0 %v1715
      %v1825 = vpop.f32.mrf.mxu0
      %v1826 = vadd.f32 0.0, %v1825
      %v1827 = vpop.f32.mrf.mxu0
      %1828 = vmatmul.bf16.gmra.mxu0 %v1718
      %v1829 = vpop.f32.mrf.mxu0
      %v1830 = vadd.f32 0.0, %v1829
      %v1831 = vpop.f32.mrf.mxu0
      %v1832 = vadd.f32 0.0, %v1831
      %1833 = vmatmul.bf16.gmra.mxu0 %v1721
      %v1834 = vpop.f32.mrf.mxu0
      %v1835 = vpop.f32.mrf.mxu0
      %v1836 = vadd.f32 0.0, %v1835
      %1837 = vmatmul.bf16.gmra.mxu0 %v1724
      %v1838 = vpop.f32.mrf.mxu0
      %v1839 = vadd.f32 0.0, %v1838
      %v1840 = vpop.f32.mrf.mxu0
      %1841 = vdwg.mxu0
      %v1842 = vadd.f32 %v1445, %v1739
      %v1843 = vadd.f32 %v1446, %v1741
      %v1844 = vadd.f32 %v1447, %v1745
      %v1845 = vadd.f32 %v1448, %v1748
      %v1846 = vadd.f32 %v1449, %v1752
      %v1847 = vadd.f32 %v1450, %v1754
      %v1848 = vadd.f32 %v1451, %v1758
      %v1849 = vadd.f32 %v1452, %v1761
      %v1850 = vadd.f32 %v1453, %v1765
      %v1851 = vadd.f32 %v1454, %v1767
      %v1852 = vadd.f32 %v1455, %v1771
      %v1853 = vadd.f32 %v1456, %v1774
      %v1854 = vadd.f32 %v1457, %v1778
      %v1855 = vadd.f32 %v1458, %v1780
      %v1856 = vadd.f32 %v1459, %v1784
      %v1857 = vadd.f32 %v1460, %v1787
      %v1858 = vadd.f32 %v1461, %v1791
      %v1859 = vadd.f32 %v1462, %v1793
      %v1860 = vadd.f32 %v1463, %v1797
      %v1861 = vadd.f32 %v1464, %v1800
      %v1862 = vadd.f32 %v1465, %v1804
      %v1863 = vadd.f32 %v1466, %v1806
      %v1864 = vadd.f32 %v1467, %v1810
      %v1865 = vadd.f32 %v1468, %v1813
      %v1866 = vadd.f32 %v1469, %v1817
      %v1867 = vadd.f32 %v1470, %v1819
      %v1868 = vadd.f32 %v1471, %v1823
      %v1869 = vadd.f32 %v1472, %v1826
      %v1870 = vadd.f32 %v1473, %v1830
      %v1871 = vadd.f32 %v1474, %v1832
      %v1872 = vadd.f32 %v1475, %v1836
      %v1873 = vadd.f32 %v1476, %v1839
      %s1874 = scalar_lea.vmem %s1, 10
      %v1875 = vld [vmem:[%s1874] sm:$0x3]
      %v1876 = vrot.slane %v1233, 1
      %v1877 = vrot.slane %v1234, 1
      %v1878 = vsel %vm957, %v1876, %v1877
      %v1879 = vrot.slane %v1235, 1
      %v1880 = vsel %vm957, %v1877, %v1879
      %v1881 = vrot.slane %v1236, 1
      %v1882 = vsel %vm957, %v1879, %v1881
      %v1883 = vrot.slane %v1237, 1
      %v1884 = vsel %vm957, %v1881, %v1883
      %v1885 = vrot.slane %v1238, 1
      %v1886 = vsel %vm957, %v1883, %v1885
      %v1887 = vrot.slane %v1239, 1
      %v1888 = vsel %vm957, %v1885, %v1887
      %v1889 = vrot.slane %v1240, 1
      %v1890 = vsel %vm957, %v1887, %v1889
      %v1891 = vrot.slane %v1241, 1
      %v1892 = vsel %vm957, %v1889, %v1891
      %v1893 = vrot.slane %v1242, 1
      %v1894 = vsel %vm957, %v1891, %v1893
      %v1895 = vrot.slane %v1243, 1
      %v1896 = vsel %vm957, %v1893, %v1895
      %v1897 = vrot.slane %v1244, 1
      %v1898 = vsel %vm957, %v1895, %v1897
      %v1899 = vrot.slane %v1245, 1
      %v1900 = vsel %vm957, %v1897, %v1899
      %v1901 = vrot.slane %v1246, 1
      %v1902 = vsel %vm957, %v1899, %v1901
      %v1903 = vrot.slane %v1247, 1
      %v1904 = vsel %vm957, %v1901, %v1903
      %v1905 = vrot.slane %v1248, 1
      %v1906 = vsel %vm957, %v1903, %v1905
      %v1907 = vrot.slane %v1249, 1
      %v1908 = vsel %vm957, %v1905, %v1907
      %v1909 = vrot.slane %v1250, 1
      %v1910 = vsel %vm957, %v1907, %v1909
      %v1911 = vrot.slane %v1251, 1
      %v1912 = vsel %vm957, %v1909, %v1911
      %v1913 = vrot.slane %v1252, 1
      %v1914 = vsel %vm957, %v1911, %v1913
      %v1915 = vrot.slane %v1253, 1
      %v1916 = vsel %vm957, %v1913, %v1915
      %v1917 = vrot.slane %v1254, 1
      %v1918 = vsel %vm957, %v1915, %v1917
      %v1919 = vrot.slane %v1255, 1
      %v1920 = vsel %vm957, %v1917, %v1919
      %v1921 = vrot.slane %v1256, 1
      %v1922 = vsel %vm957, %v1919, %v1921
      %v1923 = vrot.slane %v1481, 1
      %v1924 = vsel %vm957, %v1921, %v1923
      %v1926 = vsel %vm601, %v1878, 0
      %v1929 = vsel %vm601, %v1880, 0
      %v1932 = vsel %vm601, %v1882, 0
      %v1935 = vsel %vm601, %v1884, 0
      %v1938 = vsel %vm601, %v1886, 0
      %v1941 = vsel %vm601, %v1888, 0
      %v1944 = vsel %vm601, %v1890, 0
      %v1947 = vsel %vm601, %v1892, 0
      %v1950 = vsel %vm601, %v1894, 0
      %v1953 = vsel %vm601, %v1896, 0
      %v1956 = vsel %vm601, %v1898, 0
      %v1959 = vsel %vm601, %v1900, 0
      %v1962 = vsel %vm601, %v1902, 0
      %v1965 = vsel %vm601, %v1904, 0
      %v1968 = vsel %vm601, %v1906, 0
      %v1971 = vsel %vm601, %v1908, 0
      %v1974 = vsel %vm601, %v1910, 0
      %v1977 = vsel %vm601, %v1912, 0
      %v1980 = vsel %vm601, %v1914, 0
      %v1983 = vsel %vm601, %v1916, 0
      %v1986 = vsel %vm601, %v1918, 0
      %v1989 = vsel %vm601, %v1920, 0
      %v1992 = vsel %vm601, %v1922, 0
      %v1995 = vsel %vm601, %v1924, 0
      %v1998 = vsel %vm674, %v1875, 0
      %2000 = vmatpush.bf16.msra.mxu0 0
      %2001 = vmatpush.bf16.msra.mxu0 0
      %2002 = vmatpush.bf16.msra.mxu0 0
      %2003 = vmatpush.bf16.msra.mxu0 0
      %2004 = vmatpush.bf16.msra.mxu0 0
      %2005 = vmatpush.bf16.msra.mxu0 0
      %2006 = vmatpush.bf16.msra.mxu0 0
      %2007 = vmatpush.bf16.msra.mxu0 %v1998
      %2008 = vmatmul.bf16.gmra.mxu0 %v1926
      %v2009 = vpop.f32.mrf.mxu0
      %v2010 = vadd.f32 0.0, %v2009
      %v2011 = vpop.f32.mrf.mxu0
      %v2012 = vadd.f32 0.0, %v2011
      %2013 = vmatmul.bf16.gmra.mxu0 %v1929
      %v2014 = vpop.f32.mrf.mxu0
      %v2015 = vpop.f32.mrf.mxu0
      %v2016 = vadd.f32 0.0, %v2015
      %2017 = vmatmul.bf16.gmra.mxu0 %v1932
      %v2018 = vpop.f32.mrf.mxu0
      %v2019 = vadd.f32 0.0, %v2018
      %v2020 = vpop.f32.mrf.mxu0
      %2021 = vmatmul.bf16.gmra.mxu0 %v1935
      %v2022 = vpop.f32.mrf.mxu0
      %v2023 = vadd.f32 0.0, %v2022
      %v2024 = vpop.f32.mrf.mxu0
      %v2025 = vadd.f32 0.0, %v2024
      %2026 = vmatmul.bf16.gmra.mxu0 %v1938
      %v2027 = vpop.f32.mrf.mxu0
      %v2028 = vpop.f32.mrf.mxu0
      %v2029 = vadd.f32 0.0, %v2028
      %2030 = vmatmul.bf16.gmra.mxu0 %v1941
      %v2031 = vpop.f32.mrf.mxu0
      %v2032 = vadd.f32 0.0, %v2031
      %v2033 = vpop.f32.mrf.mxu0
      %2034 = vmatmul.bf16.gmra.mxu0 %v1944
      %v2035 = vpop.f32.mrf.mxu0
      %v2036 = vadd.f32 0.0, %v2035
      %v2037 = vpop.f32.mrf.mxu0
      %v2038 = vadd.f32 0.0, %v2037
      %2039 = vmatmul.bf16.gmra.mxu0 %v1947
      %v2040 = vpop.f32.mrf.mxu0
      %v2041 = vpop.f32.mrf.mxu0
      %v2042 = vadd.f32 0.0, %v2041
      %2043 = vmatmul.bf16.gmra.mxu0 %v1950
      %v2044 = vpop.f32.mrf.mxu0
      %v2045 = vadd.f32 0.0, %v2044
      %v2046 = vpop.f32.mrf.mxu0
      %2047 = vmatmul.bf16.gmra.mxu0 %v1953
      %v2048 = vpop.f32.mrf.mxu0
      %v2049 = vadd.f32 0.0, %v2048
      %v2050 = vpop.f32.mrf.mxu0
      %v2051 = vadd.f32 0.0, %v2050
      %2052 = vmatmul.bf16.gmra.mxu0 %v1956
      %v2053 = vpop.f32.mrf.mxu0
      %v2054 = vpop.f32.mrf.mxu0
      %v2055 = vadd.f32 0.0, %v2054
      %2056 = vmatmul.bf16.gmra.mxu0 %v1959
      %v2057 = vpop.f32.mrf.mxu0
      %v2058 = vadd.f32 0.0, %v2057
      %v2059 = vpop.f32.mrf.mxu0
      %2060 = vmatmul.bf16.gmra.mxu0 %v1962
      %v2061 = vpop.f32.mrf.mxu0
      %v2062 = vadd.f32 0.0, %v2061
      %v2063 = vpop.f32.mrf.mxu0
      %v2064 = vadd.f32 0.0, %v2063
      %2065 = vmatmul.bf16.gmra.mxu0 %v1965
      %v2066 = vpop.f32.mrf.mxu0
      %v2067 = vpop.f32.mrf.mxu0
      %v2068 = vadd.f32 0.0, %v2067
      %2069 = vmatmul.bf16.gmra.mxu0 %v1968
      %v2070 = vpop.f32.mrf.mxu0
      %v2071 = vadd.f32 0.0, %v2070
      %v2072 = vpop.f32.mrf.mxu0
      %2073 = vmatmul.bf16.gmra.mxu0 %v1971
      %v2074 = vpop.f32.mrf.mxu0
      %v2075 = vadd.f32 0.0, %v2074
      %v2076 = vpop.f32.mrf.mxu0
      %v2077 = vadd.f32 0.0, %v2076
      %2078 = vmatmul.bf16.gmra.mxu0 %v1974
      %v2079 = vpop.f32.mrf.mxu0
      %v2080 = vpop.f32.mrf.mxu0
      %v2081 = vadd.f32 0.0, %v2080
      %2082 = vmatmul.bf16.gmra.mxu0 %v1977
      %v2083 = vpop.f32.mrf.mxu0
      %v2084 = vadd.f32 0.0, %v2083
      %v2085 = vpop.f32.mrf.mxu0
      %2086 = vmatmul.bf16.gmra.mxu0 %v1980
      %v2087 = vpop.f32.mrf.mxu0
      %v2088 = vadd.f32 0.0, %v2087
      %v2089 = vpop.f32.mrf.mxu0
      %v2090 = vadd.f32 0.0, %v2089
      %2091 = vmatmul.bf16.gmra.mxu0 %v1983
      %v2092 = vpop.f32.mrf.mxu0
      %v2093 = vpop.f32.mrf.mxu0
      %v2094 = vadd.f32 0.0, %v2093
      %2095 = vmatmul.bf16.gmra.mxu0 %v1986
      %v2096 = vpop.f32.mrf.mxu0
      %v2097 = vadd.f32 0.0, %v2096
      %v2098 = vpop.f32.mrf.mxu0
      %2099 = vmatmul.bf16.gmra.mxu0 %v1989
      %v2100 = vpop.f32.mrf.mxu0
      %v2101 = vadd.f32 0.0, %v2100
      %v2102 = vpop.f32.mrf.mxu0
      %v2103 = vadd.f32 0.0, %v2102
      %2104 = vmatmul.bf16.gmra.mxu0 %v1992
      %v2105 = vpop.f32.mrf.mxu0
      %v2106 = vpop.f32.mrf.mxu0
      %v2107 = vadd.f32 0.0, %v2106
      %2108 = vmatmul.bf16.gmra.mxu0 %v1995
      %v2109 = vpop.f32.mrf.mxu0
      %v2110 = vadd.f32 0.0, %v2109
      %v2111 = vpop.f32.mrf.mxu0
      %2112 = vdwg.mxu0
      %v2113 = vadd.f32 %v1842, %v2010
      %v2114 = vadd.f32 %v1843, %v2012
      %v2115 = vadd.f32 %v1844, %v2016
      %v2116 = vadd.f32 %v1845, %v2019
      %v2117 = vadd.f32 %v1846, %v2023
      %v2118 = vadd.f32 %v1847, %v2025
      %v2119 = vadd.f32 %v1848, %v2029
      %v2120 = vadd.f32 %v1849, %v2032
      %v2121 = vadd.f32 %v1850, %v2036
      %v2122 = vadd.f32 %v1851, %v2038
      %v2123 = vadd.f32 %v1852, %v2042
      %v2124 = vadd.f32 %v1853, %v2045
      %v2125 = vadd.f32 %v1854, %v2049
      %v2126 = vadd.f32 %v1855, %v2051
      %v2127 = vadd.f32 %v1856, %v2055
      %v2128 = vadd.f32 %v1857, %v2058
      %v2129 = vadd.f32 %v1858, %v2062
      %v2130 = vadd.f32 %v1859, %v2064
      %v2131 = vadd.f32 %v1860, %v2068
      %v2132 = vadd.f32 %v1861, %v2071
      %v2133 = vadd.f32 %v1862, %v2075
      %v2134 = vadd.f32 %v1863, %v2077
      %v2135 = vadd.f32 %v1864, %v2081
      %v2136 = vadd.f32 %v1865, %v2084
      %v2137 = vadd.f32 %v1866, %v2088
      %v2138 = vadd.f32 %v1867, %v2090
      %v2139 = vadd.f32 %v1868, %v2094
      %v2140 = vadd.f32 %v1869, %v2097
      %v2141 = vadd.f32 %v1870, %v2101
      %v2142 = vadd.f32 %v1871, %v2103
      %v2143 = vadd.f32 %v1872, %v2107
      %v2144 = vadd.f32 %v1873, %v2110
      %s2145 = scalar_lea.vmem %s1, 12
      %v2146 = vld [vmem:[%s2145] sm:$0x3]
      %v2149 = vunpack.c.l.b16 %v275
      %v2150 = vunpack.c.l.b16 %v276
      %v2151 = vpack.c.b16 %v1231, %v378
      %v2152 = vpack.c.b16 %v1480, %v1232
      %v2153 = vpack.c.b16 %v2150, %v2149
      %v2155 = vsel %vm601, %v2151, 0
      %v2158 = vsel %vm601, %v2152, 0
      %v2161 = vsel %vm601, %v2153, 0
      %v2164 = vsel %vm674, %v2146, 0
      %2166 = vmatpush.bf16.msra.mxu0 0
      %2167 = vmatpush.bf16.msra.mxu0 0
      %2168 = vmatpush.bf16.msra.mxu0 0
      %2169 = vmatpush.bf16.msra.mxu0 0
      %2170 = vmatpush.bf16.msra.mxu0 0
      %2171 = vmatpush.bf16.msra.mxu0 0
      %2172 = vmatpush.bf16.msra.mxu0 0
      %2173 = vmatpush.bf16.msra.mxu0 %v2164
      %2174 = vmatmul.bf16.gmra.mxu0 %v797
      %v2175 = vpop.f32.mrf.mxu0
      %v2176 = vadd.f32 0.0, %v2175
      %v2177 = vpop.f32.mrf.mxu0
      %v2178 = vadd.f32 0.0, %v2177
      %2179 = vmatmul.bf16.gmra.mxu0 %v799
      %v2180 = vpop.f32.mrf.mxu0
      %v2181 = vpop.f32.mrf.mxu0
      %v2182 = vadd.f32 0.0, %v2181
      %2183 = vmatmul.bf16.gmra.mxu0 %v801
      %v2184 = vpop.f32.mrf.mxu0
      %v2185 = vadd.f32 0.0, %v2184
      %v2186 = vpop.f32.mrf.mxu0
      %2187 = vmatmul.bf16.gmra.mxu0 %v803
      %v2188 = vpop.f32.mrf.mxu0
      %v2189 = vadd.f32 0.0, %v2188
      %v2190 = vpop.f32.mrf.mxu0
      %v2191 = vadd.f32 0.0, %v2190
      %2192 = vmatmul.bf16.gmra.mxu0 %v805
      %v2193 = vpop.f32.mrf.mxu0
      %v2194 = vpop.f32.mrf.mxu0
      %v2195 = vadd.f32 0.0, %v2194
      %2196 = vmatmul.bf16.gmra.mxu0 %v807
      %v2197 = vpop.f32.mrf.mxu0
      %v2198 = vadd.f32 0.0, %v2197
      %v2199 = vpop.f32.mrf.mxu0
      %2200 = vmatmul.bf16.gmra.mxu0 %v809
      %v2201 = vpop.f32.mrf.mxu0
      %v2202 = vadd.f32 0.0, %v2201
      %v2203 = vpop.f32.mrf.mxu0
      %v2204 = vadd.f32 0.0, %v2203
      %2205 = vmatmul.bf16.gmra.mxu0 %v811
      %v2206 = vpop.f32.mrf.mxu0
      %v2207 = vpop.f32.mrf.mxu0
      %v2208 = vadd.f32 0.0, %v2207
      %2209 = vmatmul.bf16.gmra.mxu0 %v813
      %v2210 = vpop.f32.mrf.mxu0
      %v2211 = vadd.f32 0.0, %v2210
      %v2212 = vpop.f32.mrf.mxu0
      %2213 = vmatmul.bf16.gmra.mxu0 %v815
      %v2214 = vpop.f32.mrf.mxu0
      %v2215 = vadd.f32 0.0, %v2214
      %v2216 = vpop.f32.mrf.mxu0
      %v2217 = vadd.f32 0.0, %v2216
      %2218 = vmatmul.bf16.gmra.mxu0 %v817
      %v2219 = vpop.f32.mrf.mxu0
      %v2220 = vpop.f32.mrf.mxu0
      %v2221 = vadd.f32 0.0, %v2220
      %2222 = vmatmul.bf16.gmra.mxu0 %v819
      %v2223 = vpop.f32.mrf.mxu0
      %v2224 = vadd.f32 0.0, %v2223
      %v2225 = vpop.f32.mrf.mxu0
      %2226 = vmatmul.bf16.gmra.mxu0 %v821
      %v2227 = vpop.f32.mrf.mxu0
      %v2228 = vadd.f32 0.0, %v2227
      %v2229 = vpop.f32.mrf.mxu0
      %v2230 = vadd.f32 0.0, %v2229
      %2231 = vmatmul.bf16.gmra.mxu0 %v823
      %v2232 = vpop.f32.mrf.mxu0
      %v2233 = vpop.f32.mrf.mxu0
      %v2234 = vadd.f32 0.0, %v2233
      %2235 = vmatmul.bf16.gmra.mxu0 %v825
      %v2236 = vpop.f32.mrf.mxu0
      %v2237 = vadd.f32 0.0, %v2236
      %v2238 = vpop.f32.mrf.mxu0
      %2239 = vmatmul.bf16.gmra.mxu0 %v827
      %v2240 = vpop.f32.mrf.mxu0
      %v2241 = vadd.f32 0.0, %v2240
      %v2242 = vpop.f32.mrf.mxu0
      %v2243 = vadd.f32 0.0, %v2242
      %2244 = vmatmul.bf16.gmra.mxu0 %v829
      %v2245 = vpop.f32.mrf.mxu0
      %v2246 = vpop.f32.mrf.mxu0
      %v2247 = vadd.f32 0.0, %v2246
      %2248 = vmatmul.bf16.gmra.mxu0 %v831
      %v2249 = vpop.f32.mrf.mxu0
      %v2250 = vadd.f32 0.0, %v2249
      %v2251 = vpop.f32.mrf.mxu0
      %2252 = vmatmul.bf16.gmra.mxu0 %v833
      %v2253 = vpop.f32.mrf.mxu0
      %v2254 = vadd.f32 0.0, %v2253
      %v2255 = vpop.f32.mrf.mxu0
      %v2256 = vadd.f32 0.0, %v2255
      %2257 = vmatmul.bf16.gmra.mxu0 %v835
      %v2258 = vpop.f32.mrf.mxu0
      %v2259 = vpop.f32.mrf.mxu0
      %v2260 = vadd.f32 0.0, %v2259
      %2261 = vmatmul.bf16.gmra.mxu0 %v837
      %v2262 = vpop.f32.mrf.mxu0
      %v2263 = vadd.f32 0.0, %v2262
      %v2264 = vpop.f32.mrf.mxu0
      %2265 = vmatmul.bf16.gmra.mxu0 %v2155
      %v2266 = vpop.f32.mrf.mxu0
      %v2267 = vadd.f32 0.0, %v2266
      %v2268 = vpop.f32.mrf.mxu0
      %v2269 = vadd.f32 0.0, %v2268
      %2270 = vmatmul.bf16.gmra.mxu0 %v2158
      %v2271 = vpop.f32.mrf.mxu0
      %v2272 = vpop.f32.mrf.mxu0
      %v2273 = vadd.f32 0.0, %v2272
      %2274 = vmatmul.bf16.gmra.mxu0 %v2161
      %v2275 = vpop.f32.mrf.mxu0
      %v2276 = vadd.f32 0.0, %v2275
      %v2277 = vpop.f32.mrf.mxu0
      %2278 = vdwg.mxu0
      %v2279 = vadd.f32 %v2113, %v2176
      %v2280 = vadd.f32 %v2114, %v2178
      %v2281 = vadd.f32 %v2115, %v2182
      %v2282 = vadd.f32 %v2116, %v2185
      %v2283 = vadd.f32 %v2117, %v2189
      %v2284 = vadd.f32 %v2118, %v2191
      %v2285 = vadd.f32 %v2119, %v2195
      %v2286 = vadd.f32 %v2120, %v2198
      %v2287 = vadd.f32 %v2121, %v2202
      %v2288 = vadd.f32 %v2122, %v2204
      %v2289 = vadd.f32 %v2123, %v2208
      %v2290 = vadd.f32 %v2124, %v2211
      %v2291 = vadd.f32 %v2125, %v2215
      %v2292 = vadd.f32 %v2126, %v2217
      %v2293 = vadd.f32 %v2127, %v2221
      %v2294 = vadd.f32 %v2128, %v2224
      %v2295 = vadd.f32 %v2129, %v2228
      %v2296 = vadd.f32 %v2130, %v2230
      %v2297 = vadd.f32 %v2131, %v2234
      %v2298 = vadd.f32 %v2132, %v2237
      %v2299 = vadd.f32 %v2133, %v2241
      %v2300 = vadd.f32 %v2134, %v2243
      %v2301 = vadd.f32 %v2135, %v2247
      %v2302 = vadd.f32 %v2136, %v2250
      %v2303 = vadd.f32 %v2137, %v2254
      %v2304 = vadd.f32 %v2138, %v2256
      %v2305 = vadd.f32 %v2139, %v2260
      %v2306 = vadd.f32 %v2140, %v2263
      %v2307 = vadd.f32 %v2141, %v2267
      %v2308 = vadd.f32 %v2142, %v2269
      %v2309 = vadd.f32 %v2143, %v2273
      %v2310 = vadd.f32 %v2144, %v2276
      %s2311 = scalar_lea.vmem %s1, 14
      %v2312 = vld [vmem:[%s2311] sm:$0x3]
      %v2314 = vunpack.c.l.b16 %v277
      %v2315 = vpack.c.b16 %v2314, %v2314
      %v2316 = vshll.u32 %v2151, 16
      %v2318 = vrot.slane %v2316, 1
      %v2319 = vsel %vm404, %v595, %v2318
      %v2320 = vshrl.u32 %v2151, 16
      %v2322 = vor.u32 %v2320, %v2318
      %v2323 = vshll.u32 %v2152, 16
      %v2325 = vrot.slane %v2323, 1
      %v2326 = vsel %vm404, %v2322, %v2325
      %v2327 = vshrl.u32 %v2152, 16
      %v2329 = vor.u32 %v2327, %v2325
      %v2330 = vshll.u32 %v2153, 16
      %v2332 = vrot.slane %v2330, 1
      %v2333 = vsel %vm404, %v2329, %v2332
      %v2334 = vshrl.u32 %v2153, 16
      %v2336 = vor.u32 %v2334, %v2332
      %v2338 = vshll.u32 %v2315, 16
      %v2340 = vrot.slane %v2338, 1
      %v2341 = vsel %vm404, %v2336, %v2340
      %v2343 = vsel %vm601, %v2319, 0
      %v2346 = vsel %vm601, %v2326, 0
      %v2349 = vsel %vm601, %v2333, 0
      %v2352 = vsel %vm601, %v2341, 0
      %v2355 = vsel %vm674, %v2312, 0
      %2357 = vmatpush.bf16.msra.mxu0 0
      %2358 = vmatpush.bf16.msra.mxu0 0
      %2359 = vmatpush.bf16.msra.mxu0 0
      %2360 = vmatpush.bf16.msra.mxu0 0
      %2361 = vmatpush.bf16.msra.mxu0 0
      %2362 = vmatpush.bf16.msra.mxu0 0
      %2363 = vmatpush.bf16.msra.mxu0 0
      %2364 = vmatpush.bf16.msra.mxu0 %v2355
      %2365 = vmatmul.bf16.gmra.mxu0 %v612
      %v2366 = vpop.f32.mrf.mxu0
      %v2367 = vadd.f32 0.0, %v2366
      %v2368 = vpop.f32.mrf.mxu0
      %v2369 = vadd.f32 0.0, %v2368
      %2370 = vmatmul.bf16.gmra.mxu0 %v615
      %v2371 = vpop.f32.mrf.mxu0
      %v2372 = vpop.f32.mrf.mxu0
      %v2373 = vadd.f32 0.0, %v2372
      %2374 = vmatmul.bf16.gmra.mxu0 %v618
      %v2375 = vpop.f32.mrf.mxu0
      %v2376 = vadd.f32 0.0, %v2375
      %v2377 = vpop.f32.mrf.mxu0
      %2378 = vmatmul.bf16.gmra.mxu0 %v621
      %v2379 = vpop.f32.mrf.mxu0
      %v2380 = vadd.f32 0.0, %v2379
      %v2381 = vpop.f32.mrf.mxu0
      %v2382 = vadd.f32 0.0, %v2381
      %2383 = vmatmul.bf16.gmra.mxu0 %v624
      %v2384 = vpop.f32.mrf.mxu0
      %v2385 = vpop.f32.mrf.mxu0
      %v2386 = vadd.f32 0.0, %v2385
      %2387 = vmatmul.bf16.gmra.mxu0 %v627
      %v2388 = vpop.f32.mrf.mxu0
      %v2389 = vadd.f32 0.0, %v2388
      %v2390 = vpop.f32.mrf.mxu0
      %2391 = vmatmul.bf16.gmra.mxu0 %v630
      %v2392 = vpop.f32.mrf.mxu0
      %v2393 = vadd.f32 0.0, %v2392
      %v2394 = vpop.f32.mrf.mxu0
      %v2395 = vadd.f32 0.0, %v2394
      %2396 = vmatmul.bf16.gmra.mxu0 %v633
      %v2397 = vpop.f32.mrf.mxu0
      %v2398 = vpop.f32.mrf.mxu0
      %v2399 = vadd.f32 0.0, %v2398
      %2400 = vmatmul.bf16.gmra.mxu0 %v636
      %v2401 = vpop.f32.mrf.mxu0
      %v2402 = vadd.f32 0.0, %v2401
      %v2403 = vpop.f32.mrf.mxu0
      %2404 = vmatmul.bf16.gmra.mxu0 %v639
      %v2405 = vpop.f32.mrf.mxu0
      %v2406 = vadd.f32 0.0, %v2405
      %v2407 = vpop.f32.mrf.mxu0
      %v2408 = vadd.f32 0.0, %v2407
      %2409 = vmatmul.bf16.gmra.mxu0 %v642
      %v2410 = vpop.f32.mrf.mxu0
      %v2411 = vpop.f32.mrf.mxu0
      %v2412 = vadd.f32 0.0, %v2411
      %2413 = vmatmul.bf16.gmra.mxu0 %v645
      %v2414 = vpop.f32.mrf.mxu0
      %v2415 = vadd.f32 0.0, %v2414
      %v2416 = vpop.f32.mrf.mxu0
      %2417 = vmatmul.bf16.gmra.mxu0 %v648
      %v2418 = vpop.f32.mrf.mxu0
      %v2419 = vadd.f32 0.0, %v2418
      %v2420 = vpop.f32.mrf.mxu0
      %v2421 = vadd.f32 0.0, %v2420
      %2422 = vmatmul.bf16.gmra.mxu0 %v651
      %v2423 = vpop.f32.mrf.mxu0
      %v2424 = vpop.f32.mrf.mxu0
      %v2425 = vadd.f32 0.0, %v2424
      %2426 = vmatmul.bf16.gmra.mxu0 %v654
      %v2427 = vpop.f32.mrf.mxu0
      %v2428 = vadd.f32 0.0, %v2427
      %v2429 = vpop.f32.mrf.mxu0
      %2430 = vmatmul.bf16.gmra.mxu0 %v657
      %v2431 = vpop.f32.mrf.mxu0
      %v2432 = vadd.f32 0.0, %v2431
      %v2433 = vpop.f32.mrf.mxu0
      %v2434 = vadd.f32 0.0, %v2433
      %2435 = vmatmul.bf16.gmra.mxu0 %v660
      %v2436 = vpop.f32.mrf.mxu0
      %v2437 = vpop.f32.mrf.mxu0
      %v2438 = vadd.f32 0.0, %v2437
      %2439 = vmatmul.bf16.gmra.mxu0 %v663
      %v2440 = vpop.f32.mrf.mxu0
      %v2441 = vadd.f32 0.0, %v2440
      %v2442 = vpop.f32.mrf.mxu0
      %2443 = vmatmul.bf16.gmra.mxu0 %v666
      %v2444 = vpop.f32.mrf.mxu0
      %v2445 = vadd.f32 0.0, %v2444
      %v2446 = vpop.f32.mrf.mxu0
      %v2447 = vadd.f32 0.0, %v2446
      %2448 = vmatmul.bf16.gmra.mxu0 %v669
      %v2449 = vpop.f32.mrf.mxu0
      %v2450 = vpop.f32.mrf.mxu0
      %v2451 = vadd.f32 0.0, %v2450
      %2452 = vmatmul.bf16.gmra.mxu0 %v2343
      %v2453 = vpop.f32.mrf.mxu0
      %v2454 = vadd.f32 0.0, %v2453
      %v2455 = vpop.f32.mrf.mxu0
      %2456 = vmatmul.bf16.gmra.mxu0 %v2346
      %v2457 = vpop.f32.mrf.mxu0
      %v2458 = vadd.f32 0.0, %v2457
      %v2459 = vpop.f32.mrf.mxu0
      %v2460 = vadd.f32 0.0, %v2459
      %2461 = vmatmul.bf16.gmra.mxu0 %v2349
      %v2462 = vpop.f32.mrf.mxu0
      %v2463 = vpop.f32.mrf.mxu0
      %v2464 = vadd.f32 0.0, %v2463
      %2465 = vmatmul.bf16.gmra.mxu0 %v2352
      %v2466 = vpop.f32.mrf.mxu0
      %v2467 = vadd.f32 0.0, %v2466
      %v2468 = vpop.f32.mrf.mxu0
      %2469 = vdwg.mxu0
      %v2470 = vadd.f32 %v2279, %v2367
      %v2471 = vadd.f32 %v2280, %v2369
      %v2472 = vadd.f32 %v2281, %v2373
      %v2473 = vadd.f32 %v2282, %v2376
      %v2474 = vadd.f32 %v2283, %v2380
      %v2475 = vadd.f32 %v2284, %v2382
      %v2476 = vadd.f32 %v2285, %v2386
      %v2477 = vadd.f32 %v2286, %v2389
      %v2478 = vadd.f32 %v2287, %v2393
      %v2479 = vadd.f32 %v2288, %v2395
      %v2480 = vadd.f32 %v2289, %v2399
      %v2481 = vadd.f32 %v2290, %v2402
      %v2482 = vadd.f32 %v2291, %v2406
      %v2483 = vadd.f32 %v2292, %v2408
      %v2484 = vadd.f32 %v2293, %v2412
      %v2485 = vadd.f32 %v2294, %v2415
      %v2486 = vadd.f32 %v2295, %v2419
      %v2487 = vadd.f32 %v2296, %v2421
      %v2488 = vadd.f32 %v2297, %v2425
      %v2489 = vadd.f32 %v2298, %v2428
      %v2490 = vadd.f32 %v2299, %v2432
      %v2491 = vadd.f32 %v2300, %v2434
      %v2492 = vadd.f32 %v2301, %v2438
      %v2493 = vadd.f32 %v2302, %v2441
      %v2494 = vadd.f32 %v2303, %v2445
      %v2495 = vadd.f32 %v2304, %v2447
      %v2496 = vadd.f32 %v2305, %v2451
      %v2497 = vadd.f32 %v2306, %v2454
      %v2498 = vadd.f32 %v2307, %v2458
      %v2499 = vadd.f32 %v2308, %v2460
      %v2500 = vadd.f32 %v2309, %v2464
      %v2501 = vadd.f32 %v2310, %v2467
      %s2502 = scalar_lea.vmem %s1, 16
      %v2503 = vld [vmem:[%s2502] sm:$0x3]
      %v2504 = vrot.slane %v2151, 1
      %v2505 = vsel %vm957, %v1003, %v2504
      %v2506 = vrot.slane %v2152, 1
      %v2507 = vsel %vm957, %v2504, %v2506
      %v2508 = vrot.slane %v2153, 1
      %v2509 = vsel %vm957, %v2506, %v2508
      %v2510 = vrot.slane %v2315, 1
      %v2511 = vsel %vm957, %v2508, %v2510
      %v2513 = vsel %vm601, %v2505, 0
      %v2516 = vsel %vm601, %v2507, 0
      %v2519 = vsel %vm601, %v2509, 0
      %v2522 = vsel %vm601, %v2511, 0
      %v2525 = vsel %vm674, %v2503, 0
      %2527 = vmatpush.bf16.msra.mxu0 0
      %2528 = vmatpush.bf16.msra.mxu0 0
      %2529 = vmatpush.bf16.msra.mxu0 0
      %2530 = vmatpush.bf16.msra.mxu0 0
      %2531 = vmatpush.bf16.msra.mxu0 0
      %2532 = vmatpush.bf16.msra.mxu0 0
      %2533 = vmatpush.bf16.msra.mxu0 0
      %2534 = vmatpush.bf16.msra.mxu0 %v2525
      %2535 = vmatmul.bf16.gmra.mxu0 %v1017
      %v2536 = vpop.f32.mrf.mxu0
      %v2537 = vadd.f32 0.0, %v2536
      %v2538 = vpop.f32.mrf.mxu0
      %v2539 = vadd.f32 0.0, %v2538
      %2540 = vmatmul.bf16.gmra.mxu0 %v1020
      %v2541 = vpop.f32.mrf.mxu0
      %v2542 = vpop.f32.mrf.mxu0
      %v2543 = vadd.f32 0.0, %v2542
      %2544 = vmatmul.bf16.gmra.mxu0 %v1023
      %v2545 = vpop.f32.mrf.mxu0
      %v2546 = vadd.f32 0.0, %v2545
      %v2547 = vpop.f32.mrf.mxu0
      %2548 = vmatmul.bf16.gmra.mxu0 %v1026
      %v2549 = vpop.f32.mrf.mxu0
      %v2550 = vadd.f32 0.0, %v2549
      %v2551 = vpop.f32.mrf.mxu0
      %v2552 = vadd.f32 0.0, %v2551
      %2553 = vmatmul.bf16.gmra.mxu0 %v1029
      %v2554 = vpop.f32.mrf.mxu0
      %v2555 = vpop.f32.mrf.mxu0
      %v2556 = vadd.f32 0.0, %v2555
      %2557 = vmatmul.bf16.gmra.mxu0 %v1032
      %v2558 = vpop.f32.mrf.mxu0
      %v2559 = vadd.f32 0.0, %v2558
      %v2560 = vpop.f32.mrf.mxu0
      %2561 = vmatmul.bf16.gmra.mxu0 %v1035
      %v2562 = vpop.f32.mrf.mxu0
      %v2563 = vadd.f32 0.0, %v2562
      %v2564 = vpop.f32.mrf.mxu0
      %v2565 = vadd.f32 0.0, %v2564
      %2566 = vmatmul.bf16.gmra.mxu0 %v1038
      %v2567 = vpop.f32.mrf.mxu0
      %v2568 = vpop.f32.mrf.mxu0
      %v2569 = vadd.f32 0.0, %v2568
      %2570 = vmatmul.bf16.gmra.mxu0 %v1041
      %v2571 = vpop.f32.mrf.mxu0
      %v2572 = vadd.f32 0.0, %v2571
      %v2573 = vpop.f32.mrf.mxu0
      %2574 = vmatmul.bf16.gmra.mxu0 %v1044
      %v2575 = vpop.f32.mrf.mxu0
      %v2576 = vadd.f32 0.0, %v2575
      %v2577 = vpop.f32.mrf.mxu0
      %v2578 = vadd.f32 0.0, %v2577
      %2579 = vmatmul.bf16.gmra.mxu0 %v1047
      %v2580 = vpop.f32.mrf.mxu0
      %v2581 = vpop.f32.mrf.mxu0
      %v2582 = vadd.f32 0.0, %v2581
      %2583 = vmatmul.bf16.gmra.mxu0 %v1050
      %v2584 = vpop.f32.mrf.mxu0
      %v2585 = vadd.f32 0.0, %v2584
      %v2586 = vpop.f32.mrf.mxu0
      %2587 = vmatmul.bf16.gmra.mxu0 %v1053
      %v2588 = vpop.f32.mrf.mxu0
      %v2589 = vadd.f32 0.0, %v2588
      %v2590 = vpop.f32.mrf.mxu0
      %v2591 = vadd.f32 0.0, %v2590
      %2592 = vmatmul.bf16.gmra.mxu0 %v1056
      %v2593 = vpop.f32.mrf.mxu0
      %v2594 = vpop.f32.mrf.mxu0
      %v2595 = vadd.f32 0.0, %v2594
      %2596 = vmatmul.bf16.gmra.mxu0 %v1059
      %v2597 = vpop.f32.mrf.mxu0
      %v2598 = vadd.f32 0.0, %v2597
      %v2599 = vpop.f32.mrf.mxu0
      %2600 = vmatmul.bf16.gmra.mxu0 %v1062
      %v2601 = vpop.f32.mrf.mxu0
      %v2602 = vadd.f32 0.0, %v2601
      %v2603 = vpop.f32.mrf.mxu0
      %v2604 = vadd.f32 0.0, %v2603
      %2605 = vmatmul.bf16.gmra.mxu0 %v1065
      %v2606 = vpop.f32.mrf.mxu0
      %v2607 = vpop.f32.mrf.mxu0
      %v2608 = vadd.f32 0.0, %v2607
      %2609 = vmatmul.bf16.gmra.mxu0 %v1068
      %v2610 = vpop.f32.mrf.mxu0
      %v2611 = vadd.f32 0.0, %v2610
      %v2612 = vpop.f32.mrf.mxu0
      %2613 = vmatmul.bf16.gmra.mxu0 %v1071
      %v2614 = vpop.f32.mrf.mxu0
      %v2615 = vadd.f32 0.0, %v2614
      %v2616 = vpop.f32.mrf.mxu0
      %v2617 = vadd.f32 0.0, %v2616
      %2618 = vmatmul.bf16.gmra.mxu0 %v1074
      %v2619 = vpop.f32.mrf.mxu0
      %v2620 = vpop.f32.mrf.mxu0
      %v2621 = vadd.f32 0.0, %v2620
      %2622 = vmatmul.bf16.gmra.mxu0 %v2513
      %v2623 = vpop.f32.mrf.mxu0
      %v2624 = vadd.f32 0.0, %v2623
      %v2625 = vpop.f32.mrf.mxu0
      %2626 = vmatmul.bf16.gmra.mxu0 %v2516
      %v2627 = vpop.f32.mrf.mxu0
      %v2628 = vadd.f32 0.0, %v2627
      %v2629 = vpop.f32.mrf.mxu0
      %v2630 = vadd.f32 0.0, %v2629
      %2631 = vmatmul.bf16.gmra.mxu0 %v2519
      %v2632 = vpop.f32.mrf.mxu0
      %v2633 = vpop.f32.mrf.mxu0
      %v2634 = vadd.f32 0.0, %v2633
      %2635 = vmatmul.bf16.gmra.mxu0 %v2522
      %v2636 = vpop.f32.mrf.mxu0
      %v2637 = vadd.f32 0.0, %v2636
      %v2638 = vpop.f32.mrf.mxu0
      %2639 = vdwg.mxu0
      %v2640 = vadd.f32 %v2470, %v2537
      %v2641 = vadd.f32 %v2471, %v2539
      %v2642 = vadd.f32 %v2472, %v2543
      %v2643 = vadd.f32 %v2473, %v2546
      %v2644 = vadd.f32 %v2474, %v2550
      %v2645 = vadd.f32 %v2475, %v2552
      %v2646 = vadd.f32 %v2476, %v2556
      %v2647 = vadd.f32 %v2477, %v2559
      %v2648 = vadd.f32 %v2478, %v2563
      %v2649 = vadd.f32 %v2479, %v2565
      %v2650 = vadd.f32 %v2480, %v2569
      %v2651 = vadd.f32 %v2481, %v2572
      %v2652 = vadd.f32 %v2482, %v2576
      %v2653 = vadd.f32 %v2483, %v2578
      %v2654 = vadd.f32 %v2484, %v2582
      %v2655 = vadd.f32 %v2485, %v2585
      %v2656 = vadd.f32 %v2486, %v2589
      %v2657 = vadd.f32 %v2487, %v2591
      %v2658 = vadd.f32 %v2488, %v2595
      %v2659 = vadd.f32 %v2489, %v2598
      %v2660 = vadd.f32 %v2490, %v2602
      %v2661 = vadd.f32 %v2491, %v2604
      %v2662 = vadd.f32 %v2492, %v2608
      %v2663 = vadd.f32 %v2493, %v2611
      %v2664 = vadd.f32 %v2494, %v2615
      %v2665 = vadd.f32 %v2495, %v2617
      %v2666 = vadd.f32 %v2496, %v2621
      %v2667 = vadd.f32 %v2497, %v2624
      %v2668 = vadd.f32 %v2498, %v2628
      %v2669 = vadd.f32 %v2499, %v2630
      %v2670 = vadd.f32 %v2500, %v2634
      %v2671 = vadd.f32 %v2501, %v2637
      %v2672 = vld [vmem:[%s2] sm:$0x1]
      %v2674 = vperm.slane %v2672, 0
      %v2676 = vmul.f32 %v2640, %v2674
      %v2677 = vmul.f32 %v2641, %v2674
      %v2678 = vmul.f32 %v2642, %v2674
      %v2679 = vmul.f32 %v2643, %v2674
      %v2680 = vmul.f32 %v2644, %v2674
      %v2681 = vmul.f32 %v2645, %v2674
      %v2682 = vmul.f32 %v2646, %v2674
      %v2683 = vmul.f32 %v2647, %v2674
      %v2684 = vmul.f32 %v2648, %v2674
      %v2685 = vmul.f32 %v2649, %v2674
      %v2686 = vmul.f32 %v2650, %v2674
      %v2687 = vmul.f32 %v2651, %v2674
      %v2688 = vmul.f32 %v2652, %v2674
      %v2689 = vmul.f32 %v2653, %v2674
      %v2690 = vmul.f32 %v2654, %v2674
      %v2691 = vmul.f32 %v2655, %v2674
      %v2692 = vmul.f32 %v2656, %v2674
      %v2693 = vmul.f32 %v2657, %v2674
      %v2694 = vmul.f32 %v2658, %v2674
      %v2695 = vmul.f32 %v2659, %v2674
      %v2696 = vmul.f32 %v2660, %v2674
      %v2697 = vmul.f32 %v2661, %v2674
      %v2698 = vmul.f32 %v2662, %v2674
      %v2699 = vmul.f32 %v2663, %v2674
      %v2700 = vmul.f32 %v2664, %v2674
      %v2701 = vmul.f32 %v2665, %v2674
      %v2702 = vmul.f32 %v2666, %v2674
      %v2703 = vmul.f32 %v2667, %v2674
      %v2704 = vmul.f32 %v2668, %v2674
      %v2705 = vmul.f32 %v2669, %v2674
      %v2706 = vmul.f32 %v2670, %v2674
      %v2707 = vmul.f32 %v2671, %v2674
      %v2708 = vld [vmem:[%s3] sm:$0x1]
      %v2710 = vperm.slane %v2708, 0
      %v2712 = vadd.f32 %v2676, %v2710
      %v2713 = vadd.f32 %v2677, %v2710
      %v2714 = vadd.f32 %v2678, %v2710
      %v2715 = vadd.f32 %v2679, %v2710
      %v2716 = vadd.f32 %v2680, %v2710
      %v2717 = vadd.f32 %v2681, %v2710
      %v2718 = vadd.f32 %v2682, %v2710
      %v2719 = vadd.f32 %v2683, %v2710
      %v2720 = vadd.f32 %v2684, %v2710
      %v2721 = vadd.f32 %v2685, %v2710
      %v2722 = vadd.f32 %v2686, %v2710
      %v2723 = vadd.f32 %v2687, %v2710
      %v2724 = vadd.f32 %v2688, %v2710
      %v2725 = vadd.f32 %v2689, %v2710
      %v2726 = vadd.f32 %v2690, %v2710
      %v2727 = vadd.f32 %v2691, %v2710
      %v2728 = vadd.f32 %v2692, %v2710
      %v2729 = vadd.f32 %v2693, %v2710
      %v2730 = vadd.f32 %v2694, %v2710
      %v2731 = vadd.f32 %v2695, %v2710
      %v2732 = vadd.f32 %v2696, %v2710
      %v2733 = vadd.f32 %v2697, %v2710
      %v2734 = vadd.f32 %v2698, %v2710
      %v2735 = vadd.f32 %v2699, %v2710
      %v2736 = vadd.f32 %v2700, %v2710
      %v2737 = vadd.f32 %v2701, %v2710
      %v2738 = vadd.f32 %v2702, %v2710
      %v2739 = vadd.f32 %v2703, %v2710
      %v2740 = vadd.f32 %v2704, %v2710
      %v2741 = vadd.f32 %v2705, %v2710
      %v2742 = vadd.f32 %v2706, %v2710
      %v2743 = vadd.f32 %v2707, %v2710
      %v2744 = vmax.f32 %v2712, 0.0
      %v2745 = vmax.f32 %v2713, 0.0
      %v2746 = vmax.f32 %v2714, 0.0
      %v2747 = vmax.f32 %v2715, 0.0
      %v2748 = vmax.f32 %v2716, 0.0
      %v2749 = vmax.f32 %v2717, 0.0
      %v2750 = vmax.f32 %v2718, 0.0
      %v2751 = vmax.f32 %v2719, 0.0
      %v2752 = vmax.f32 %v2720, 0.0
      %v2753 = vmax.f32 %v2721, 0.0
      %v2754 = vmax.f32 %v2722, 0.0
      %v2755 = vmax.f32 %v2723, 0.0
      %v2756 = vmax.f32 %v2724, 0.0
      %v2757 = vmax.f32 %v2725, 0.0
      %v2758 = vmax.f32 %v2726, 0.0
      %v2759 = vmax.f32 %v2727, 0.0
      %v2760 = vmax.f32 %v2728, 0.0
      %v2761 = vmax.f32 %v2729, 0.0
      %v2762 = vmax.f32 %v2730, 0.0
      %v2763 = vmax.f32 %v2731, 0.0
      %v2764 = vmax.f32 %v2732, 0.0
      %v2765 = vmax.f32 %v2733, 0.0
      %v2766 = vmax.f32 %v2734, 0.0
      %v2767 = vmax.f32 %v2735, 0.0
      %v2768 = vmax.f32 %v2736, 0.0
      %v2769 = vmax.f32 %v2737, 0.0
      %v2770 = vmax.f32 %v2738, 0.0
      %v2771 = vmax.f32 %v2739, 0.0
      %v2772 = vmax.f32 %v2740, 0.0
      %v2773 = vmax.f32 %v2741, 0.0
      %v2774 = vmax.f32 %v2742, 0.0
      %v2775 = vmax.f32 %v2743, 0.0
      %vm2776 = vcmask 64512
      %2777 = vst.msk [vmem:[%s220] sm:$0xff] %vm2776, %v2744
      %2778 = vst.msk [vmem:[%s220 + $0x8] sm:$0xff] %vm2776, %v2745
      %2779 = vst.msk [vmem:[%s220 + $0x10] sm:$0xff] %vm2776, %v2746
      %2780 = vst.msk [vmem:[%s220 + $0x18] sm:$0xff] %vm2776, %v2747
      %2781 = vst.msk [vmem:[%s220 + $0x20] sm:$0xff] %vm2776, %v2748
      %2782 = vst.msk [vmem:[%s220 + $0x28] sm:$0xff] %vm2776, %v2749
      %2783 = vst.msk [vmem:[%s220 + $0x30] sm:$0xff] %vm2776, %v2750
      %2784 = vst.msk [vmem:[%s220 + $0x38] sm:$0xff] %vm2776, %v2751
      %2785 = vst.msk [vmem:[%s220 + $0x40] sm:$0xff] %vm2776, %v2752
      %2786 = vst.msk [vmem:[%s220 + $0x48] sm:$0xff] %vm2776, %v2753
      %2787 = vst.msk [vmem:[%s220 + $0x50] sm:$0xff] %vm2776, %v2754
      %2788 = vst.msk [vmem:[%s220 + $0x58] sm:$0xff] %vm2776, %v2755
      %2789 = vst.msk [vmem:[%s220 + $0x60] sm:$0xff] %vm2776, %v2756
      %2790 = vst.msk [vmem:[%s220 + $0x68] sm:$0xff] %vm2776, %v2757
      %2791 = vst.msk [vmem:[%s220 + $0x70] sm:$0xff] %vm2776, %v2758
      %2792 = vst.msk [vmem:[%s220 + $0x78] sm:$0xff] %vm2776, %v2759
      %2793 = vst.msk [vmem:[%s220 + $0x80] sm:$0xff] %vm2776, %v2760
      %2794 = vst.msk [vmem:[%s220 + $0x88] sm:$0xff] %vm2776, %v2761
      %2795 = vst.msk [vmem:[%s220 + $0x90] sm:$0xff] %vm2776, %v2762
      %2796 = vst.msk [vmem:[%s220 + $0x98] sm:$0xff] %vm2776, %v2763
      %2797 = vst.msk [vmem:[%s220 + $0xa0] sm:$0xff] %vm2776, %v2764
      %2798 = vst.msk [vmem:[%s220 + $0xa8] sm:$0xff] %vm2776, %v2765
      %2799 = vst.msk [vmem:[%s220 + $0xb0] sm:$0xff] %vm2776, %v2766
      %2800 = vst.msk [vmem:[%s220 + $0xb8] sm:$0xff] %vm2776, %v2767
      %2801 = vst.msk [vmem:[%s220 + $0xc0] sm:$0xff] %vm2776, %v2768
      %2802 = vst.msk [vmem:[%s220 + $0xc8] sm:$0xff] %vm2776, %v2769
      %2803 = vst.msk [vmem:[%s220 + $0xd0] sm:$0xff] %vm2776, %v2770
      %2804 = vst.msk [vmem:[%s220 + $0xd8] sm:$0xff] %vm2776, %v2771
      %2805 = vst.msk [vmem:[%s220 + $0xe0] sm:$0xff] %vm2776, %v2772
      %2806 = vst.msk [vmem:[%s220 + $0xe8] sm:$0xff] %vm2776, %v2773
      %2807 = vst.msk [vmem:[%s220 + $0xf0] sm:$0xff] %vm2776, %v2774
      %2808 = vst.msk [vmem:[%s220 + $0xf8] sm:$0xff] %vm2776, %v2775
      %s2809 = sadd.s32 %s19, %s20
      %p2810 = scmp.lt.s32.totalorder %s2809, 1
      %s2811 = scalar_select %p2810, %s2809, 1
      %s2812 = smul.addr %s2811, 32
      %s2813 = smul.addr %s2812, 8
      %s2814 = scalar_lea.vmem %s4, %s2813
      // Predicated region
      $region37: #{unet_encode_layer.1} parent=35 // pred_check
        %p2815 = pneg %p138
      $region38: #{unet_encode_layer.1} parent=35 // pred_check_branch
        %2817 = sbr.rel (%p2815) target = $region40
      $region39: #{unet_encode_layer.1} parent=35 // pred_region
        %s2818 = sadd.s32 %s19, %s20
      $region40: #{unet_encode_layer.1} parent=35 // pred_fallthru
        _
    $region36: #{unet_encode_layer.1} parent=5 // pred_fallthru
      _
    %p2819 = scmp.le.s32.totalorder 2, %s10
    // Predicated region
    $region41: #{unet_encode_layer.1} parent=5 // pred_check
      %p2820 = pneg %p2819
    $region42: #{unet_encode_layer.1} parent=5 // pred_check_branch
      %2822 = sbr.rel (%p2820) target = $region44
    $region43: #{unet_encode_layer.1} parent=5 // pred_region
      %s2823 = ssub.s32 %s10, 2
      // Predicated region
      $region45: #{unet_encode_layer.1} parent=43 // pred_check
        %p2824 = pneg %p144
      $region46: #{unet_encode_layer.1} parent=43 // pred_check_branch
        %2826 = sbr.rel (%p2824) target = $region48
      $region47: #{unet_encode_layer.1} parent=43 // pred_region
        %s2827 = sadd.s32 %s21, %s22
        %p2828 = scmp.lt.s32.totalorder %s2827, 1
        %s2829 = scalar_select %p2828, %s2827, 1
        %s2830 = smul.addr %s2829, 32
        %s2831 = smul.addr %s2830, 8
        %s2832 = scalar_lea.vmem %s4, %s2831
      $region48: #{unet_encode_layer.1} parent=43 // pred_fallthru
        _
    $region44: #{unet_encode_layer.1} parent=5 // pred_fallthru
      _
  $region6: #{unet_encode_layer.1} parent=0 // loop_footer
    %s14 = sadd.s32 1, %s10
  $region7: #{unet_encode_layer.1} parent=0 // loop_footer_branch
    %9 = sbr.rel target = $region3
  $region8: #{unet_encode_layer.1} parent=0 // loop_exit
    _

</llo_original>
